<compile_context>
chip_gen: v6e
topology: v6e:2x2x1
jax: 0.10.0
libtpu: 0.0.40
codegen_flags: <defaults>
</compile_context>

<pallas_src>
import functools

import jax
import jax.numpy as jnp
from jax.experimental import pallas as pl
from jax.experimental.pallas import tpu as pltpu

ENC_DIM = 512     # encoder feature size (fixed by the module)
ATT_DIM = 512     # attention_dims (fixed by the module)


def _round_up(x, m):
    return ((x + m - 1) // m) * m


def _vmem_limit_bytes():
    """Generation-aware VMEM budget (~75% of physical): ~48 MiB on v7x (64 MiB),
    ~96 MiB on v5e/v6e (128 MiB)."""
    try:
        cap = pltpu.get_tpu_info().vmem_capacity_bytes
        return max(32 << 20, int(cap) * 3 // 4)
    except Exception:
        return 48 << 20


# ---------------------------------------------------------------------------
# Fused sequence kernel: one grid step = one (batch tile, timestep)
# ---------------------------------------------------------------------------
def _rnn_seq_kernel(b_valid, tb, bp,
                    xk_ref, xq_ref, h0_ref,
                    we_ref, be_ref, wd_ref, bd_ref, wf_ref,
                    w1_ref, b1_ref, w2_ref, b2_ref, w3a_ref, b3a_ref,
                    comb_ref, h_scr):
    t = pl.program_id(1)

    # (Re)load the initial hidden state at the first timestep of each batch tile.
    @pl.when(t == 0)
    def _():
        h_scr[...] = h0_ref[...]

    h = h_scr[...]                                   # (tb, N) f32 recurrent state
    h_bf = h.astype(jnp.bfloat16)
    xk = xk_ref[0]                                   # (Bp, E) bf16  -- all keys
    xq = xq_ref[0]                                   # (tb, E) f32   -- query tile

    # --- projections (bf16 MXU operands, f32 accumulation) ---------------------
    att1 = jnp.dot(xk, we_ref[...], preferred_element_type=jnp.float32) + be_ref[...]
    att2 = jnp.dot(h_bf, wd_ref[...], preferred_element_type=jnp.float32) + bd_ref[...]
    s2 = jnp.dot(h_bf, w2_ref[...], preferred_element_type=jnp.float32) + b2_ref[...]

    # --- additive cross-batch attention (full_att bias cancels in the softmax) --
    pre = jnp.maximum(att1[None, :, :] + att2[:, None, :], 0.0)       # (tb, Bp, A)
    scores = jnp.sum(pre * wf_ref[...][None, :, :], axis=-1)          # (tb, Bp)

    if b_valid < bp:  # mask padded key rows (trace-time constant condition)
        key_ok = jax.lax.broadcasted_iota(jnp.int32, (tb, bp), 1) < b_valid
        scores = jnp.where(key_ok, scores, -1e30)

    # softmax over keys (dim=1 in the PyTorch code); exact division
    m = jnp.max(scores, axis=-1, keepdims=True)
    e = jnp.exp(scores - m)
    alpha = e / jnp.sum(e, axis=-1, keepdims=True)                    # (tb, Bp)

    # --- attention-weighted encoding + combine ---------------------------------
    awe = jnp.dot(alpha.astype(jnp.bfloat16), xk,
                  preferred_element_type=jnp.float32)                 # (tb, E)
    iw = xq * awe                                                     # input_weighted
    # NOTE: Testfc1(input_weighted) in the original forward is dead code -> skipped
    fc1 = jnp.dot(iw.astype(jnp.bfloat16), w1_ref[...],
                  preferred_element_type=jnp.float32) + b1_ref[...]   # (tb, N)
    hnew = jnp.maximum(s2 + fc1, 0.0)                                 # relu(fc2(h)+fc1)
    h_scr[...] = hnew

    # Lane-dense fused epilogue: W3aug = [W3^T | I_N | 0], so one >=128-lane store
    # yields [fc3(hnew) | hnew | 0].  f32 matmul keeps the state pass-through exact.
    comb_ref[0] = (jnp.dot(hnew, w3a_ref[...],
                           preferred_element_type=jnp.float32) + b3a_ref[...])


# ---------------------------------------------------------------------------
# Parameter synthesis (PyTorch nn.Linear default init, deterministic)
# ---------------------------------------------------------------------------
def _linear(key, fan_in, fan_out):
    kw, kb = jax.random.split(key)
    bound = 1.0 / (fan_in ** 0.5)
    w = jax.random.uniform(kw, (fan_out, fan_in), jnp.float32, -bound, bound)
    b = jax.random.uniform(kb, (fan_out,), jnp.float32, -bound, bound)
    return w, b


def init_rnn_single_params(key, ndims):
    ks = jax.random.split(key, 7)
    return {
        "encoder_att": _linear(ks[0], ENC_DIM, ATT_DIM),
        "decoder_att": _linear(ks[1], ndims, ATT_DIM),
        "full_att":    _linear(ks[2], ATT_DIM, 1),
        "fc1":         _linear(ks[3], ENC_DIM, ndims),
        "Testfc1":     _linear(ks[4], ENC_DIM, ndims),   # present in module, unused
        "fc2":         _linear(ks[5], ndims, ndims),
        "fc3":         _linear(ks[6], ndims, 2),
    }


def prepare_params(p):
    """Fold torch (out,in) weights into matmul-ready layouts; bf16 operands for the
    MXU contractions; W3/b3 augmented into a lane-dense [out | state] projector."""
    we, be = p["encoder_att"]
    wd, bd = p["decoder_att"]
    wf, _bf = p["full_att"]            # full_att bias cancels inside the softmax
    w1, b1 = p["fc1"]
    w2, b2 = p["fc2"]
    w3, b3 = p["fc3"]
    n = w2.shape[0]
    lanes = max(128, _round_up(2 + n, 128))
    w3a = jnp.zeros((n, lanes), jnp.float32)
    w3a = w3a.at[:, 0:2].set(jnp.transpose(w3)).at[:, 2:2 + n].set(jnp.eye(n))
    b3a = jnp.zeros((1, lanes), jnp.float32).at[0, 0:2].set(b3)
    return dict(
        we_t=jnp.transpose(we).astype(jnp.bfloat16),   # (E, A)
        be=be.reshape(1, -1),
        wd_t=jnp.transpose(wd).astype(jnp.bfloat16),   # (N, A)
        bd=bd.reshape(1, -1),
        wf=wf.reshape(1, -1),                          # (1, A)
        w1_t=jnp.transpose(w1).astype(jnp.bfloat16),   # (E, N)
        b1=b1.reshape(1, -1),
        w2_t=jnp.transpose(w2).astype(jnp.bfloat16),   # (N, N)
        b2=b2.reshape(1, -1),
        w3a=w3a,                                       # (N, lanes) f32
        b3a=b3a,                                       # (1, lanes) f32
    )


# ---------------------------------------------------------------------------
# Wrappers
# ---------------------------------------------------------------------------
def rnn_single_sequence(params, x_seq, state0):
    """Run the whole recurrence in ONE pallas_call.
    x_seq: (T, B, 512), state0: (B, ndims).
    Returns (outputs (T, B, 2), final_state (B, ndims))."""
    t_len, b, e = x_seq.shape
    n = state0.shape[1]
    a = ATT_DIM
    lanes = params["w3a"].shape[1]

    b8 = _round_up(b, 8)
    tb = b8 if b8 <= 128 else 128          # batch tile (rows); multiple of 8
    bp = _round_up(b8, tb)
    nb = bp // tb
    pad = bp - b

    x_f32 = jnp.pad(x_seq.astype(jnp.float32), ((0, 0), (0, pad), (0, 0)))
    x_bf16 = x_f32.astype(jnp.bfloat16)                 # resident full-key copy
    h0 = jnp.pad(state0.astype(jnp.float32), ((0, pad), (0, 0)))

    const = lambda i, t: (0, 0)

    comb = pl.pallas_call(
        functools.partial(_rnn_seq_kernel, b, tb, bp),
        grid=(nb, t_len),
        in_specs=[
            pl.BlockSpec((1, bp, e), lambda i, t: (t, 0, 0)),   # x keys (bf16, full)
            pl.BlockSpec((1, tb, e), lambda i, t: (t, i, 0)),   # x query tile (f32)
            pl.BlockSpec((tb, n), lambda i, t: (i, 0)),         # initial state tile
            pl.BlockSpec((e, a), const),        # We^T (bf16)
            pl.BlockSpec((1, a), const),        # be
            pl.BlockSpec((n, a), const),        # Wd^T (bf16)
            pl.BlockSpec((1, a), const),        # bd
            pl.BlockSpec((1, a), const),        # full_att weight
            pl.BlockSpec((e, n), const),        # W1^T (bf16)
            pl.BlockSpec((1, n), const),        # b1
            pl.BlockSpec((n, n), const),        # W2^T (bf16)
            pl.BlockSpec((1, n), const),        # b2
            pl.BlockSpec((n, lanes), const),    # W3aug (f32)
            pl.BlockSpec((1, lanes), const),    # b3aug
        ],
        out_specs=pl.BlockSpec((1, tb, lanes), lambda i, t: (t, i, 0)),
        out_shape=jax.ShapeDtypeStruct((t_len, bp, lanes), jnp.float32),
        scratch_shapes=[pltpu.VMEM((tb, n), jnp.float32)],      # recurrent state
        compiler_params=pltpu.CompilerParams(
            dimension_semantics=("parallel", "arbitrary"),
            vmem_limit_bytes=_vmem_limit_bytes(),
        ),
    )(x_bf16, x_f32, h0,
      params["we_t"], params["be"], params["wd_t"], params["bd"], params["wf"],
      params["w1_t"], params["b1"], params["w2_t"], params["b2"],
      params["w3a"], params["b3a"])

    outputs = comb[:, :b, 0:2]              # (T, B, 2)
    final_state = comb[t_len - 1, :b, 2:2 + n]
    return outputs, final_state


def rnn_single_forward(params, x, state):
    """Single-step forward, mirroring rnn_single.forward: returns (output, new_state)."""
    outs, hnew = rnn_single_sequence(params, x[None], state)
    return outs[0], hnew


def init_hidden(batch_size, ndims):
    return jnp.zeros((batch_size, ndims), jnp.float32)


# ---------------------------------------------------------------------------
# Pure-JAX reference (bit-faithful to the PyTorch forward) for validation
# ---------------------------------------------------------------------------
def _reference_step(raw, x, h):
    we, be = raw["encoder_att"]
    wd, bd = raw["decoder_att"]
    wf, bf = raw["full_att"]
    w1, b1 = raw["fc1"]
    w2, b2 = raw["fc2"]
    w3, b3 = raw["fc3"]
    att1 = x @ we.T + be                                   # (B, A)
    att2 = h @ wd.T + bd                                   # (B, A)
    pre = jax.nn.relu(att1[None, :, :] + att2[:, None, :])  # (B, B, A)
    att = jnp.einsum("pja,a->pj", pre, wf[0]) + bf[0]      # (B, B)
    alpha = jax.nn.softmax(att, axis=1)
    awe = alpha @ x                                        # (B, E)
    iw = x * awe
    hnew = jax.nn.relu((h @ w2.T + b2) + (iw @ w1.T + b1))
    out = hnew @ w3.T + b3
    return out, hnew


def _reference_sequence(raw, x_seq, h0):
    outs, h = [], h0
    for t in range(x_seq.shape[0]):
        o, h = _reference_step(raw, x_seq[t], h)
        outs.append(o)
    return jnp.stack(outs), h


# ---------------------------------------------------------------------------
if __name__ == "__main__":
    ndims = 32
    key = jax.random.PRNGKey(0)
    kp, kx1, kx2 = jax.random.split(key, 3)

    raw = init_rnn_single_params(kp, ndims)
    params = prepare_params(raw)

    # ---- single-step forward (matches rnn_single.forward) ----
    batch = 8
    x = jax.random.normal(kx1, (batch, ENC_DIM), jnp.float32)
    h0 = init_hidden(batch, ndims)
    out, h1 = jax.jit(functools.partial(rnn_single_forward, params))(x, h0)
    jax.block_until_ready((out, h1))
    ref_out, ref_h1 = _reference_step(raw, x, h0)
    assert out.shape == (batch, 2) and h1.shape == (batch, ndims)
    assert jnp.all(jnp.isfinite(out)) and jnp.all(jnp.isfinite(h1))
    assert jnp.allclose(out, ref_out, rtol=1e-1, atol=1e-1)
    assert jnp.allclose(h1, ref_h1, rtol=1e-1, atol=1e-1)

    # ---- multi-step sequence (time loop hoisted into one pallas_call),
    #      non-multiple-of-8 batch exercises the padded-key masking ----
    seq_len, batch2 = 3, 6
    xs = jax.random.normal(kx2, (seq_len, batch2, ENC_DIM), jnp.float32)
    h0b = init_hidden(batch2, ndims)
    outs, hT = jax.jit(functools.partial(rnn_single_sequence, params))(xs, h0b)
    jax.block_until_ready((outs, hT))
    ref_outs, ref_hT = _reference_sequence(raw, xs, h0b)
    assert outs.shape == (seq_len, batch2, 2) and hT.shape == (batch2, ndims)
    assert jnp.all(jnp.isfinite(outs)) and jnp.all(jnp.isfinite(hT))
    assert jnp.allclose(outs, ref_outs, rtol=1e-1, atol=1e-1)
    assert jnp.allclose(hT, ref_hT, rtol=1e-1, atol=1e-1)

    print("KERNEL_OK")
</pallas_src>

<mosaic_0001>
module attributes {stable_mosaic.version = 11 : i64} {
  func.func @_rnn_seq_kernel(%arg0: i32, %arg1: i32, %arg2: memref<1x8x512xbf16, #tpu.memory_space<vmem>>, %arg3: memref<1x8x512xf32, #tpu.memory_space<vmem>>, %arg4: memref<8x32xf32, #tpu.memory_space<vmem>>, %arg5: memref<512x512xbf16, #tpu.memory_space<vmem>>, %arg6: memref<1x512xf32, #tpu.memory_space<vmem>>, %arg7: memref<32x512xbf16, #tpu.memory_space<vmem>>, %arg8: memref<1x512xf32, #tpu.memory_space<vmem>>, %arg9: memref<1x512xf32, #tpu.memory_space<vmem>>, %arg10: memref<512x32xbf16, #tpu.memory_space<vmem>>, %arg11: memref<1x32xf32, #tpu.memory_space<vmem>>, %arg12: memref<32x32xbf16, #tpu.memory_space<vmem>>, %arg13: memref<1x32xf32, #tpu.memory_space<vmem>>, %arg14: memref<32x128xf32, #tpu.memory_space<vmem>>, %arg15: memref<1x128xf32, #tpu.memory_space<vmem>>, %arg16: memref<1x8x128xf32, #tpu.memory_space<vmem>>, %arg17: memref<8x32xf32, #tpu.memory_space<vmem>>) attributes {dimension_semantics = [#tpu.dimension_semantics<parallel>, #tpu.dimension_semantics<arbitrary>], iteration_bounds = array<i64: 1, 1>, scalar_prefetch = 0 : i64, scratch_operands = 1 : i64, tpu.core_type = #tpu.core_type<tc>, window_params = [{transform_indices = @transform_0, window_bounds = array<i64: 1, 8, 512>}, {transform_indices = @transform_1, window_bounds = array<i64: 1, 8, 512>}, {transform_indices = @transform_2, window_bounds = array<i64: 8, 32>}, {pipeline_mode = #tpu.pipeline_mode<synchronous>, transform_indices = @transform_3, window_bounds = array<i64: 512, 512>}, {pipeline_mode = #tpu.pipeline_mode<synchronous>, transform_indices = @transform_4, window_bounds = array<i64: 1, 512>}, {pipeline_mode = #tpu.pipeline_mode<synchronous>, transform_indices = @transform_5, window_bounds = array<i64: 32, 512>}, {pipeline_mode = #tpu.pipeline_mode<synchronous>, transform_indices = @transform_6, window_bounds = array<i64: 1, 512>}, {pipeline_mode = #tpu.pipeline_mode<synchronous>, transform_indices = @transform_7, window_bounds = array<i64: 1, 512>}, {pipeline_mode = #tpu.pipeline_mode<synchronous>, transform_indices = @transform_8, window_bounds = array<i64: 512, 32>}, {pipeline_mode = #tpu.pipeline_mode<synchronous>, transform_indices = @transform_9, window_bounds = array<i64: 1, 32>}, {pipeline_mode = #tpu.pipeline_mode<synchronous>, transform_indices = @transform_10, window_bounds = array<i64: 32, 32>}, {pipeline_mode = #tpu.pipeline_mode<synchronous>, transform_indices = @transform_11, window_bounds = array<i64: 1, 32>}, {pipeline_mode = #tpu.pipeline_mode<synchronous>, transform_indices = @transform_12, window_bounds = array<i64: 32, 128>}, {pipeline_mode = #tpu.pipeline_mode<synchronous>, transform_indices = @transform_13, window_bounds = array<i64: 1, 128>}, {transform_indices = @transform_14, window_bounds = array<i64: 1, 8, 128>}]} {
    %c0_i32 = arith.constant 0 : i32
    %0 = arith.cmpi eq, %arg1, %c0_i32 : i32
    %1 = arith.extui %0 : i1 to i32
    %c0_i32_0 = arith.constant 0 : i32
    %2 = arith.cmpi ne, %1, %c0_i32_0 : i32
    scf.if %2 {
      %c0_45 = arith.constant 0 : index
      %c0_46 = arith.constant 0 : index
      %66 = vector.load %arg4[%c0_45, %c0_46] : memref<8x32xf32, #tpu.memory_space<vmem>>, vector<8x32xf32>
      %c0_47 = arith.constant 0 : index
      %c0_48 = arith.constant 0 : index
      %67 = vector.load %arg17[%c0_47, %c0_48] : memref<8x32xf32, #tpu.memory_space<vmem>>, vector<8x32xf32>
      tpu.vector_store %arg17[%c0_47, %c0_48], %66 {strides = array<i32>} : memref<8x32xf32, #tpu.memory_space<vmem>>, vector<8x32xf32>,
    } else {
    }
    %c0 = arith.constant 0 : index
    %c0_1 = arith.constant 0 : index
    %3 = vector.load %arg17[%c0, %c0_1] : memref<8x32xf32, #tpu.memory_space<vmem>>, vector<8x32xf32>
    %4 = arith.truncf %3 : vector<8x32xf32> to vector<8x32xbf16>
    %c0_2 = arith.constant 0 : index
    %c0_3 = arith.constant 0 : index
    %c0_4 = arith.constant 0 : index
    %5 = vector.load %arg2[%c0_2, %c0_3, %c0_4] : memref<1x8x512xbf16, #tpu.memory_space<vmem>>, vector<1x8x512xbf16>
    %6 = vector.shape_cast %5 : vector<1x8x512xbf16> to vector<8x512xbf16>
    %c0_5 = arith.constant 0 : index
    %c0_6 = arith.constant 0 : index
    %c0_7 = arith.constant 0 : index
    %7 = vector.load %arg3[%c0_5, %c0_6, %c0_7] : memref<1x8x512xf32, #tpu.memory_space<vmem>>, vector<1x8x512xf32>
    %8 = vector.shape_cast %7 : vector<1x8x512xf32> to vector<8x512xf32>
    %c0_8 = arith.constant 0 : index
    %c0_9 = arith.constant 0 : index
    %9 = vector.load %arg5[%c0_8, %c0_9] : memref<512x512xbf16, #tpu.memory_space<vmem>>, vector<512x512xbf16>
    %cst = arith.constant dense<0.000000e+00> : vector<8x512xf32>
    %10 = tpu.matmul %6, %9, %cst {dimension_numbers = #tpu.dot_dimension_numbers<[1], [0], [0], [1], [0, 0, 1, 1], [], []>} : vector<8x512xbf16>, vector<512x512xbf16>, vector<8x512xf32> -> vector<8x512xf32>
    %c0_10 = arith.constant 0 : index
    %c0_11 = arith.constant 0 : index
    %11 = vector.load %arg6[%c0_10, %c0_11] : memref<1x512xf32, #tpu.memory_space<vmem>>, vector<1x512xf32>
    %12 = vector.broadcast %11 : vector<1x512xf32> to vector<8x512xf32>
    %13 = arith.addf %10, %12 : vector<8x512xf32>
    %c0_12 = arith.constant 0 : index
    %c0_13 = arith.constant 0 : index
    %14 = vector.load %arg7[%c0_12, %c0_13] : memref<32x512xbf16, #tpu.memory_space<vmem>>, vector<32x512xbf16>
    %cst_14 = arith.constant dense<0.000000e+00> : vector<8x512xf32>
    %15 = tpu.matmul %4, %14, %cst_14 {dimension_numbers = #tpu.dot_dimension_numbers<[1], [0], [0], [1], [0, 0, 1, 1], [], []>} : vector<8x32xbf16>, vector<32x512xbf16>, vector<8x512xf32> -> vector<8x512xf32>
    %c0_15 = arith.constant 0 : index
    %c0_16 = arith.constant 0 : index
    %16 = vector.load %arg8[%c0_15, %c0_16] : memref<1x512xf32, #tpu.memory_space<vmem>>, vector<1x512xf32>
    %17 = vector.broadcast %16 : vector<1x512xf32> to vector<8x512xf32>
    %18 = arith.addf %15, %17 : vector<8x512xf32>
    %c0_17 = arith.constant 0 : index
    %c0_18 = arith.constant 0 : index
    %19 = vector.load %arg12[%c0_17, %c0_18] : memref<32x32xbf16, #tpu.memory_space<vmem>>, vector<32x32xbf16>
    %cst_19 = arith.constant dense<0.000000e+00> : vector<8x32xf32>
    %20 = tpu.matmul %4, %19, %cst_19 {dimension_numbers = #tpu.dot_dimension_numbers<[1], [0], [0], [1], [0, 0, 1, 1], [], []>} : vector<8x32xbf16>, vector<32x32xbf16>, vector<8x32xf32> -> vector<8x32xf32>
    %c0_20 = arith.constant 0 : index
    %c0_21 = arith.constant 0 : index
    %21 = vector.load %arg13[%c0_20, %c0_21] : memref<1x32xf32, #tpu.memory_space<vmem>>, vector<1x32xf32>
    %22 = vector.broadcast %21 : vector<1x32xf32> to vector<8x32xf32>
    %23 = arith.addf %20, %22 : vector<8x32xf32>
    %24 = vector.shape_cast %13 : vector<8x512xf32> to vector<1x8x512xf32>
    %25 = vector.shape_cast %18 : vector<8x512xf32> to vector<8x1x512xf32>
    %26 = vector.broadcast %24 : vector<1x8x512xf32> to vector<8x8x512xf32>
    %27 = vector.broadcast %25 : vector<8x1x512xf32> to vector<8x8x512xf32>
    %28 = arith.addf %26, %27 : vector<8x8x512xf32>
    %cst_22 = arith.constant 0.000000e+00 : f32
    %29 = vector.broadcast %cst_22 : f32 to vector<8x8x512xf32>
    %30 = arith.maximumf %28, %29 : vector<8x8x512xf32>
    %c0_23 = arith.constant 0 : index
    %c0_24 = arith.constant 0 : index
    %31 = vector.load %arg9[%c0_23, %c0_24] : memref<1x512xf32, #tpu.memory_space<vmem>>, vector<1x512xf32>
    %32 = vector.shape_cast %31 : vector<1x512xf32> to vector<1x1x512xf32>
    %33 = vector.broadcast %32 : vector<1x1x512xf32> to vector<8x8x512xf32>
    %34 = arith.mulf %30, %33 : vector<8x8x512xf32>
    %cst_25 = arith.constant dense<0.000000e+00> : vector<8x8xf32>
    %35 = vector.multi_reduction <add>, %34, %cst_25 [2] : vector<8x8x512xf32> to vector<8x8xf32>
    %cst_26 = arith.constant dense<0xFF800000> : vector<8xf32>
    %36 = vector.multi_reduction <maximumf>, %35, %cst_26 [1] : vector<8x8xf32> to vector<8xf32>
    %37 = vector.shape_cast %36 : vector<8xf32> to vector<8x1xf32>
    %38 = vector.broadcast %37 : vector<8x1xf32> to vector<8x8xf32>
    %39 = arith.subf %35, %38 : vector<8x8xf32>
    %40 = math.exp %39 : vector<8x8xf32>
    %cst_27 = arith.constant dense<0.000000e+00> : vector<8xf32>
    %41 = vector.multi_reduction <add>, %40, %cst_27 [1] : vector<8x8xf32> to vector<8xf32>
    %42 = vector.shape_cast %41 : vector<8xf32> to vector<8x1xf32>
    %43 = vector.broadcast %42 : vector<8x1xf32> to vector<8x8xf32>
    %44 = arith.divf %40, %43 : vector<8x8xf32>
    %45 = arith.truncf %44 : vector<8x8xf32> to vector<8x8xbf16>
    %cst_28 = arith.constant dense<0.000000e+00> : vector<8x512xf32>
    %46 = tpu.matmul %45, %6, %cst_28 {dimension_numbers = #tpu.dot_dimension_numbers<[1], [0], [0], [1], [0, 0, 1, 1], [], []>} : vector<8x8xbf16>, vector<8x512xbf16>, vector<8x512xf32> -> vector<8x512xf32>
    %47 = arith.mulf %8, %46 : vector<8x512xf32>
    %48 = arith.truncf %47 : vector<8x512xf32> to vector<8x512xbf16>
    %c0_29 = arith.constant 0 : index
    %c0_30 = arith.constant 0 : index
    %49 = vector.load %arg10[%c0_29, %c0_30] : memref<512x32xbf16, #tpu.memory_space<vmem>>, vector<512x32xbf16>
    %cst_31 = arith.constant dense<0.000000e+00> : vector<8x32xf32>
    %50 = tpu.matmul %48, %49, %cst_31 {dimension_numbers = #tpu.dot_dimension_numbers<[1], [0], [0], [1], [0, 0, 1, 1], [], []>} : vector<8x512xbf16>, vector<512x32xbf16>, vector<8x32xf32> -> vector<8x32xf32>
    %c0_32 = arith.constant 0 : index
    %c0_33 = arith.constant 0 : index
    %51 = vector.load %arg11[%c0_32, %c0_33] : memref<1x32xf32, #tpu.memory_space<vmem>>, vector<1x32xf32>
    %52 = vector.broadcast %51 : vector<1x32xf32> to vector<8x32xf32>
    %53 = arith.addf %50, %52 : vector<8x32xf32>
    %54 = arith.addf %23, %53 : vector<8x32xf32>
    %cst_34 = arith.constant 0.000000e+00 : f32
    %55 = vector.broadcast %cst_34 : f32 to vector<8x32xf32>
    %56 = arith.maximumf %54, %55 : vector<8x32xf32>
    %c0_35 = arith.constant 0 : index
    %c0_36 = arith.constant 0 : index
    %57 = vector.load %arg17[%c0_35, %c0_36] : memref<8x32xf32, #tpu.memory_space<vmem>>, vector<8x32xf32>
    tpu.vector_store %arg17[%c0_35, %c0_36], %56 {strides = array<i32>} : memref<8x32xf32, #tpu.memory_space<vmem>>, vector<8x32xf32>,
    %c0_37 = arith.constant 0 : index
    %c0_38 = arith.constant 0 : index
    %58 = vector.load %arg14[%c0_37, %c0_38] : memref<32x128xf32, #tpu.memory_space<vmem>>, vector<32x128xf32>
    %cst_39 = arith.constant dense<0.000000e+00> : vector<8x128xf32>
    %59 = tpu.matmul %56, %58, %cst_39 {dimension_numbers = #tpu.dot_dimension_numbers<[1], [0], [0], [1], [0, 0, 1, 1], [], []>} : vector<8x32xf32>, vector<32x128xf32>, vector<8x128xf32> -> vector<8x128xf32>
    %c0_40 = arith.constant 0 : index
    %c0_41 = arith.constant 0 : index
    %60 = vector.load %arg15[%c0_40, %c0_41] : memref<1x128xf32, #tpu.memory_space<vmem>>, vector<1x128xf32>
    %61 = vector.broadcast %60 : vector<1x128xf32> to vector<8x128xf32>
    %62 = arith.addf %59, %61 : vector<8x128xf32>
    %c0_42 = arith.constant 0 : index
    %c0_43 = arith.constant 0 : index
    %c0_44 = arith.constant 0 : index
    %63 = vector.load %arg16[%c0_42, %c0_43, %c0_44] : memref<1x8x128xf32, #tpu.memory_space<vmem>>, vector<1x8x128xf32>
    %64 = vector.shape_cast %63 : vector<1x8x128xf32> to vector<8x128xf32>
    %65 = vector.shape_cast %62 : vector<8x128xf32> to vector<1x8x128xf32>
    tpu.vector_store %arg16[%c0_42, %c0_43, %c0_44], %65 {strides = array<i32>} : memref<1x8x128xf32, #tpu.memory_space<vmem>>, vector<1x8x128xf32>,
    return
  }
  func.func @transform_0(%arg0: i32, %arg1: i32) -> (i32, i32, i32) {
    %c0_i32 = arith.constant 0 : i32
    %c0_i32_0 = arith.constant 0 : i32
    %c0_i32_1 = arith.constant 0 : i32
    return %arg1, %c0_i32, %c0_i32_0 : i32, i32, i32
  }
  func.func @transform_1(%arg0: i32, %arg1: i32) -> (i32, i32, i32) {
    %c0_i32 = arith.constant 0 : i32
    %c0_i32_0 = arith.constant 0 : i32
    return %arg1, %arg0, %c0_i32 : i32, i32, i32
  }
  func.func @transform_2(%arg0: i32, %arg1: i32) -> (i32, i32) {
    %c0_i32 = arith.constant 0 : i32
    %c0_i32_0 = arith.constant 0 : i32
    return %arg0, %c0_i32 : i32, i32
  }
  func.func @transform_3(%arg0: i32, %arg1: i32) -> (i32, i32) {
    %c0_i32 = arith.constant 0 : i32
    %c0_i32_0 = arith.constant 0 : i32
    %c0_i32_1 = arith.constant 0 : i32
    return %c0_i32, %c0_i32_0 : i32, i32
  }
  func.func @transform_4(%arg0: i32, %arg1: i32) -> (i32, i32) {
    %c0_i32 = arith.constant 0 : i32
    %c0_i32_0 = arith.constant 0 : i32
    %c0_i32_1 = arith.constant 0 : i32
    return %c0_i32, %c0_i32_0 : i32, i32
  }
  func.func @transform_5(%arg0: i32, %arg1: i32) -> (i32, i32) {
    %c0_i32 = arith.constant 0 : i32
    %c0_i32_0 = arith.constant 0 : i32
    %c0_i32_1 = arith.constant 0 : i32
    return %c0_i32, %c0_i32_0 : i32, i32
  }
  func.func @transform_6(%arg0: i32, %arg1: i32) -> (i32, i32) {
    %c0_i32 = arith.constant 0 : i32
    %c0_i32_0 = arith.constant 0 : i32
    %c0_i32_1 = arith.constant 0 : i32
    return %c0_i32, %c0_i32_0 : i32, i32
  }
  func.func @transform_7(%arg0: i32, %arg1: i32) -> (i32, i32) {
    %c0_i32 = arith.constant 0 : i32
    %c0_i32_0 = arith.constant 0 : i32
    %c0_i32_1 = arith.constant 0 : i32
    return %c0_i32, %c0_i32_0 : i32, i32
  }
  func.func @transform_8(%arg0: i32, %arg1: i32) -> (i32, i32) {
    %c0_i32 = arith.constant 0 : i32
    %c0_i32_0 = arith.constant 0 : i32
    %c0_i32_1 = arith.constant 0 : i32
    return %c0_i32, %c0_i32_0 : i32, i32
  }
  func.func @transform_9(%arg0: i32, %arg1: i32) -> (i32, i32) {
    %c0_i32 = arith.constant 0 : i32
    %c0_i32_0 = arith.constant 0 : i32
    %c0_i32_1 = arith.constant 0 : i32
    return %c0_i32, %c0_i32_0 : i32, i32
  }
  func.func @transform_10(%arg0: i32, %arg1: i32) -> (i32, i32) {
    %c0_i32 = arith.constant 0 : i32
    %c0_i32_0 = arith.constant 0 : i32
    %c0_i32_1 = arith.constant 0 : i32
    return %c0_i32, %c0_i32_0 : i32, i32
  }
  func.func @transform_11(%arg0: i32, %arg1: i32) -> (i32, i32) {
    %c0_i32 = arith.constant 0 : i32
    %c0_i32_0 = arith.constant 0 : i32
    %c0_i32_1 = arith.constant 0 : i32
    return %c0_i32, %c0_i32_0 : i32, i32
  }
  func.func @transform_12(%arg0: i32, %arg1: i32) -> (i32, i32) {
    %c0_i32 = arith.constant 0 : i32
    %c0_i32_0 = arith.constant 0 : i32
    %c0_i32_1 = arith.constant 0 : i32
    return %c0_i32, %c0_i32_0 : i32, i32
  }
  func.func @transform_13(%arg0: i32, %arg1: i32) -> (i32, i32) {
    %c0_i32 = arith.constant 0 : i32
    %c0_i32_0 = arith.constant 0 : i32
    %c0_i32_1 = arith.constant 0 : i32
    return %c0_i32, %c0_i32_0 : i32, i32
  }
  func.func @transform_14(%arg0: i32, %arg1: i32) -> (i32, i32, i32) {
    %c0_i32 = arith.constant 0 : i32
    %c0_i32_0 = arith.constant 0 : i32
    return %arg1, %arg0, %c0_i32 : i32, i32, i32
  }
}

</mosaic_0001>

<llo_original>
// kernel: rnn_single_forward.1
$region0: #{rnn_single_forward.1}
  #allocation0 [shape = 'u32[]', space=smem, size = 0x4, offset = 0x4, fixed_abs, tag = 'smem constant byte address 0x4 - core index']
  #allocation1 [shape = 'u32[144,128]{1,0:T(1,128)}', space=vmem, size = 0x12000, scoped, tag = 'internal scratch']
  #allocation2 [shape = 'f32[8,32]{1,0:T(8,128)}', space=vmem, size = 0x1000, scoped, tag = 'scratch operand']
  %s0 = inlined_call_operand.vmem [shape: bf16[1,8,512], index: 0, kind: input, shape index: {}]
  %s1 = inlined_call_operand.vmem [shape: f32[1,8,512], index: 1, kind: input, shape index: {}]
  %s2 = inlined_call_operand.hbm [shape: f32[8,32], index: 2, kind: input, shape index: {}]
  %s3 = inlined_call_operand.hbm [shape: bf16[512,512], index: 3, kind: input, shape index: {}]
  %s4 = inlined_call_operand.hbm [shape: f32[1,512], index: 4, kind: input, shape index: {}]
  %s5 = inlined_call_operand.hbm [shape: bf16[32,512], index: 5, kind: input, shape index: {}]
  %s6 = inlined_call_operand.hbm [shape: f32[1,512], index: 6, kind: input, shape index: {}]
  %s7 = inlined_call_operand.hbm [shape: f32[1,512], index: 7, kind: input, shape index: {}]
  %s8 = inlined_call_operand.hbm [shape: bf16[512,32], index: 8, kind: input, shape index: {}]
  %s9 = inlined_call_operand.hbm [shape: f32[1,32], index: 9, kind: input, shape index: {}]
  %s10 = inlined_call_operand.hbm [shape: bf16[32,32], index: 10, kind: input, shape index: {}]
  %s11 = inlined_call_operand.vmem [shape: f32[1,32], index: 11, kind: input, shape index: {}]
  %s12 = inlined_call_operand.vmem [shape: f32[32,128], index: 12, kind: input, shape index: {}]
  %s13 = inlined_call_operand.vmem [shape: f32[1,128], index: 13, kind: input, shape index: {}]
  %s14 = inlined_call_operand.vmem [shape: f32[1,8,128], index: 14, kind: output, shape index: {}]
  %s15 = sld [smem:[#allocation0]]
  $region106: #{rnn_single_forward.1} parent=0
    _
  %s17 = ssub.s32 1, %s15
  %s18 = scalar_select 0, %s17, %s15
  $region1: #{rnn_single_forward.1} parent=0
    #allocation3 [shape = 'u8[4096]{0}', space=vmem, size = 0x1000, scoped, tag = 'input window, operand 2, single buffered']
    #allocation4 [shape = 's32[1]{0}', space=sflag, size = 0x4, scoped, tag = 'scoped memory for rnn_single_forward.1']
    #allocation5 [shape = 'u8[524288]{0}', space=vmem, size = 0x80000, scoped, tag = 'input window, operand 3, single buffered']
    #allocation6 [shape = 's32[1]{0}', space=sflag, size = 0x4, scoped, tag = 'scoped memory for rnn_single_forward.1']
    #allocation7 [shape = 'u8[2048]{0}', space=vmem, size = 0x800, scoped, tag = 'input window, operand 4, single buffered']
    #allocation8 [shape = 'u8[32768]{0}', space=vmem, size = 0x8000, scoped, tag = 'input window, operand 5, single buffered']
    #allocation9 [shape = 's32[1]{0}', space=sflag, size = 0x4, scoped, tag = 'scoped memory for rnn_single_forward.1']
    #allocation10 [shape = 'u8[2048]{0}', space=vmem, size = 0x800, scoped, tag = 'input window, operand 6, single buffered']
    #allocation11 [shape = 'u8[2048]{0}', space=vmem, size = 0x800, scoped, tag = 'input window, operand 7, single buffered']
    #allocation12 [shape = 's32[1]{0}', space=sflag, size = 0x4, scoped, tag = 'scoped memory for rnn_single_forward.1']
    #allocation13 [shape = 'u8[131072]{0}', space=vmem, size = 0x20000, scoped, tag = 'input window, operand 8, single buffered']
    #allocation14 [shape = 'u8[512]{0}', space=vmem, size = 0x400, scoped, tag = 'input window, operand 9, single buffered']
    #allocation15 [shape = 's32[1]{0}', space=sflag, size = 0x4, scoped, tag = 'scoped memory for rnn_single_forward.1']
    #allocation16 [shape = 'u8[8192]{0}', space=vmem, size = 0x2000, scoped, tag = 'input window, operand 10, single buffered']
    %19 = vsyncpa [#allocation4], 0
    %20 = vsyncpa [#allocation6], 0
    %21 = vsyncpa [#allocation9], 0
    %22 = vsyncpa [#allocation12], 0
    %23 = vsyncpa [#allocation15], 0
    // Predicated region
    $region2: #{rnn_single_forward.1} parent=1 // pred_check
      _
    $region3: #{rnn_single_forward.1} parent=1 // pred_check_branch
      %25 = sbr.rel (0) target = $region5
    $region4: #{rnn_single_forward.1} parent=1 // pred_region
      _
    $region5: #{rnn_single_forward.1} parent=1 // pred_fallthru
      _
    // Predicated region
    $region6: #{rnn_single_forward.1} parent=1 // pred_check
      _
    $region7: #{rnn_single_forward.1} parent=1 // pred_check_branch
      %27 = sbr.rel (0) target = $region9
    $region8: #{rnn_single_forward.1} parent=1 // pred_region
      _
    $region9: #{rnn_single_forward.1} parent=1 // pred_fallthru
      _
    // Predicated region
    $region10: #{rnn_single_forward.1} parent=1 // pred_check
      _
    $region11: #{rnn_single_forward.1} parent=1 // pred_check_branch
      %29 = sbr.rel (0) target = $region13
    $region12: #{rnn_single_forward.1} parent=1 // pred_region
      %s31 = ssub.s32 128, 128
      %32 = vsyncadd [#allocation4], %s31
      %s34 = sshll.u32 [#allocation3], 4
      %s35 = int_to_ptr.vmem [resolvable:$true] %s34
      %37 = dma.hbm_to_vmem [thread:$0]  %s2, 128, %s35, [#allocation4]
    $region13: #{rnn_single_forward.1} parent=1 // pred_fallthru
      _
    // Predicated region
    $region14: #{rnn_single_forward.1} parent=1 // pred_check
      _
    $region15: #{rnn_single_forward.1} parent=1 // pred_check_branch
      %39 = sbr.rel (0) target = $region17
    $region16: #{rnn_single_forward.1} parent=1 // pred_region
      %s41 = ssub.s32 16384, 16384
      %42 = vsyncadd [#allocation6], %s41
      %s43 = sshll.u32 [#allocation5], 4
      %s44 = int_to_ptr.vmem [resolvable:$true] %s43
      %49 = dma.hbm_to_vmem [thread:$0]  %s3, 16384, %s44, [#allocation6], 256, 256, 16
    $region17: #{rnn_single_forward.1} parent=1 // pred_fallthru
      _
    // Predicated region
    $region18: #{rnn_single_forward.1} parent=1 // pred_check
      _
    $region19: #{rnn_single_forward.1} parent=1 // pred_check_branch
      %51 = sbr.rel (0) target = $region21
    $region20: #{rnn_single_forward.1} parent=1 // pred_region
      %s53 = ssub.s32 64, 64
      %54 = vsyncadd [#allocation6], %s53
      %s56 = sshll.u32 [#allocation7], 4
      %s57 = int_to_ptr.vmem [resolvable:$true] %s56
      %59 = dma.hbm_to_vmem [thread:$0]  %s4, 64, %s57, [#allocation6]
    $region21: #{rnn_single_forward.1} parent=1 // pred_fallthru
      _
    // Predicated region
    $region22: #{rnn_single_forward.1} parent=1 // pred_check
      _
    $region23: #{rnn_single_forward.1} parent=1 // pred_check_branch
      %61 = sbr.rel (0) target = $region25
    $region24: #{rnn_single_forward.1} parent=1 // pred_region
      %s63 = ssub.s32 1024, 1024
      %64 = vsyncadd [#allocation9], %s63
      %s65 = sshll.u32 [#allocation8], 4
      %s66 = int_to_ptr.vmem [resolvable:$true] %s65
      %71 = dma.hbm_to_vmem [thread:$0]  %s5, 1024, %s66, [#allocation9], 256, 256, 16
    $region25: #{rnn_single_forward.1} parent=1 // pred_fallthru
      _
    // Predicated region
    $region26: #{rnn_single_forward.1} parent=1 // pred_check
      _
    $region27: #{rnn_single_forward.1} parent=1 // pred_check_branch
      %73 = sbr.rel (0) target = $region29
    $region28: #{rnn_single_forward.1} parent=1 // pred_region
      %s75 = ssub.s32 64, 64
      %76 = vsyncadd [#allocation9], %s75
      %s78 = sshll.u32 [#allocation10], 4
      %s79 = int_to_ptr.vmem [resolvable:$true] %s78
      %81 = dma.hbm_to_vmem [thread:$0]  %s6, 64, %s79, [#allocation9]
    $region29: #{rnn_single_forward.1} parent=1 // pred_fallthru
      _
    // Predicated region
    $region30: #{rnn_single_forward.1} parent=1 // pred_check
      _
    $region31: #{rnn_single_forward.1} parent=1 // pred_check_branch
      %83 = sbr.rel (0) target = $region33
    $region32: #{rnn_single_forward.1} parent=1 // pred_region
      %s85 = ssub.s32 64, 64
      %86 = vsyncadd [#allocation12], %s85
      %s88 = sshll.u32 [#allocation11], 4
      %s89 = int_to_ptr.vmem [resolvable:$true] %s88
      %91 = dma.hbm_to_vmem [thread:$0]  %s7, 64, %s89, [#allocation12]
    $region33: #{rnn_single_forward.1} parent=1 // pred_fallthru
      _
    // Predicated region
    $region34: #{rnn_single_forward.1} parent=1 // pred_check
      _
    $region35: #{rnn_single_forward.1} parent=1 // pred_check_branch
      %93 = sbr.rel (0) target = $region37
    $region36: #{rnn_single_forward.1} parent=1 // pred_region
      %s95 = ssub.s32 4096, 4096
      %96 = vsyncadd [#allocation12], %s95
      %s97 = sshll.u32 [#allocation13], 4
      %s98 = int_to_ptr.vmem [resolvable:$true] %s97
      %103 = dma.hbm_to_vmem [thread:$0]  %s8, 4096, %s98, [#allocation12], 64, 64, 4
    $region37: #{rnn_single_forward.1} parent=1 // pred_fallthru
      _
    // Predicated region
    $region38: #{rnn_single_forward.1} parent=1 // pred_check
      _
    $region39: #{rnn_single_forward.1} parent=1 // pred_check_branch
      %105 = sbr.rel (0) target = $region41
    $region40: #{rnn_single_forward.1} parent=1 // pred_region
      %s107 = ssub.s32 16, 16
      %108 = vsyncadd [#allocation15], %s107
      %s110 = sshll.u32 [#allocation14], 4
      %s111 = int_to_ptr.vmem [resolvable:$true] %s110
      %113 = dma.hbm_to_vmem [thread:$0]  %s9, 16, %s111, [#allocation15]
    $region41: #{rnn_single_forward.1} parent=1 // pred_fallthru
      _
    // Predicated region
    $region42: #{rnn_single_forward.1} parent=1 // pred_check
      _
    $region43: #{rnn_single_forward.1} parent=1 // pred_check_branch
      %115 = sbr.rel (0) target = $region45
    $region44: #{rnn_single_forward.1} parent=1 // pred_region
      %s117 = ssub.s32 256, 256
      %118 = vsyncadd [#allocation15], %s117
      %s119 = sshll.u32 [#allocation16], 4
      %s120 = int_to_ptr.vmem [resolvable:$true] %s119
      %125 = dma.hbm_to_vmem [thread:$0]  %s10, 256, %s120, [#allocation15], 64, 64, 4
    $region45: #{rnn_single_forward.1} parent=1 // pred_fallthru
      _
    // Predicated region
    $region46: #{rnn_single_forward.1} parent=1 // pred_check
      _
    $region47: #{rnn_single_forward.1} parent=1 // pred_check_branch
      %127 = sbr.rel (0) target = $region49
    $region48: #{rnn_single_forward.1} parent=1 // pred_region
      _
    $region49: #{rnn_single_forward.1} parent=1 // pred_fallthru
      _
    // Predicated region
    $region50: #{rnn_single_forward.1} parent=1 // pred_check
      _
    $region51: #{rnn_single_forward.1} parent=1 // pred_check_branch
      %129 = sbr.rel (0) target = $region53
    $region52: #{rnn_single_forward.1} parent=1 // pred_region
      _
    $region53: #{rnn_single_forward.1} parent=1 // pred_fallthru
      _
    // Predicated region
    $region54: #{rnn_single_forward.1} parent=1 // pred_check
      _
    $region55: #{rnn_single_forward.1} parent=1 // pred_check_branch
      %131 = sbr.rel (0) target = $region57
    $region56: #{rnn_single_forward.1} parent=1 // pred_region
      _
    $region57: #{rnn_single_forward.1} parent=1 // pred_fallthru
      _
    // Predicated region
    $region58: #{rnn_single_forward.1} parent=1 // pred_check
      _
    $region59: #{rnn_single_forward.1} parent=1 // pred_check_branch
      %133 = sbr.rel (0) target = $region61
    $region60: #{rnn_single_forward.1} parent=1 // pred_region
      %134 = dma.done [#allocation4], 128
    $region61: #{rnn_single_forward.1} parent=1 // pred_fallthru
      _
    // Predicated region
    $region62: #{rnn_single_forward.1} parent=1 // pred_check
      _
    $region63: #{rnn_single_forward.1} parent=1 // pred_check_branch
      %136 = sbr.rel (0) target = $region65
    $region64: #{rnn_single_forward.1} parent=1 // pred_region
      %137 = dma.done [#allocation6], 16384
    $region65: #{rnn_single_forward.1} parent=1 // pred_fallthru
      _
    // Predicated region
    $region66: #{rnn_single_forward.1} parent=1 // pred_check
      _
    $region67: #{rnn_single_forward.1} parent=1 // pred_check_branch
      %139 = sbr.rel (0) target = $region69
    $region68: #{rnn_single_forward.1} parent=1 // pred_region
      %140 = dma.done [#allocation6], 64
    $region69: #{rnn_single_forward.1} parent=1 // pred_fallthru
      _
    // Predicated region
    $region70: #{rnn_single_forward.1} parent=1 // pred_check
      _
    $region71: #{rnn_single_forward.1} parent=1 // pred_check_branch
      %142 = sbr.rel (0) target = $region73
    $region72: #{rnn_single_forward.1} parent=1 // pred_region
      %143 = dma.done [#allocation9], 1024
    $region73: #{rnn_single_forward.1} parent=1 // pred_fallthru
      _
    // Predicated region
    $region74: #{rnn_single_forward.1} parent=1 // pred_check
      _
    $region75: #{rnn_single_forward.1} parent=1 // pred_check_branch
      %145 = sbr.rel (0) target = $region77
    $region76: #{rnn_single_forward.1} parent=1 // pred_region
      %146 = dma.done [#allocation9], 64
    $region77: #{rnn_single_forward.1} parent=1 // pred_fallthru
      _
    // Predicated region
    $region78: #{rnn_single_forward.1} parent=1 // pred_check
      _
    $region79: #{rnn_single_forward.1} parent=1 // pred_check_branch
      %148 = sbr.rel (0) target = $region81
    $region80: #{rnn_single_forward.1} parent=1 // pred_region
      %149 = dma.done [#allocation12], 64
    $region81: #{rnn_single_forward.1} parent=1 // pred_fallthru
      _
    // Predicated region
    $region82: #{rnn_single_forward.1} parent=1 // pred_check
      _
    $region83: #{rnn_single_forward.1} parent=1 // pred_check_branch
      %151 = sbr.rel (0) target = $region85
    $region84: #{rnn_single_forward.1} parent=1 // pred_region
      %152 = dma.done [#allocation12], 4096
    $region85: #{rnn_single_forward.1} parent=1 // pred_fallthru
      _
    // Predicated region
    $region86: #{rnn_single_forward.1} parent=1 // pred_check
      _
    $region87: #{rnn_single_forward.1} parent=1 // pred_check_branch
      %154 = sbr.rel (0) target = $region89
    $region88: #{rnn_single_forward.1} parent=1 // pred_region
      %155 = dma.done [#allocation15], 16
    $region89: #{rnn_single_forward.1} parent=1 // pred_fallthru
      _
    // Predicated region
    $region90: #{rnn_single_forward.1} parent=1 // pred_check
      _
    $region91: #{rnn_single_forward.1} parent=1 // pred_check_branch
      %157 = sbr.rel (0) target = $region93
    $region92: #{rnn_single_forward.1} parent=1 // pred_region
      %158 = dma.done [#allocation15], 256
    $region93: #{rnn_single_forward.1} parent=1 // pred_fallthru
      _
    %p160 = scmp.eq.s32.totalorder 0, 0
    // Predicated region
    $region94: #{rnn_single_forward.1} parent=1 // pred_check
      %p161 = pneg %p160
    $region95: #{rnn_single_forward.1} parent=1 // pred_check_branch
      %163 = sbr.rel (%p161) target = $region97
    $region96: #{rnn_single_forward.1} parent=1 // pred_region
      %v164 = vld [vmem:[#allocation3] sm:$0xff]
      %vm165 = vcmask 261120
      %166 = vst.msk [vmem:[#allocation2] sm:$0xff] %vm165, %v164
    $region97: #{rnn_single_forward.1} parent=1 // pred_fallthru
      _
    %v167 = vld [vmem:[#allocation2] sm:$0xff]
    %v168 = vpack.c.bf16 %v167, %v167
    %v169 = vld [vmem:[%s0] sm:$0xff]
    %v170 = vld [vmem:[%s0 + $0x8] sm:$0xff]
    %v171 = vld [vmem:[%s1] sm:$0xff]
    %v172 = vld [vmem:[%s1 + $0x8] sm:$0xff]
    %v173 = vld [vmem:[%s1 + $0x10] sm:$0xff]
    %v174 = vld [vmem:[%s1 + $0x18] sm:$0xff]
    %v175 = vld [vmem:[#allocation5] sm:$0xff]
    %v176 = vld [vmem:[#allocation5 + $0x8] sm:$0xff]
    %v177 = vld [vmem:[#allocation5 + $0x10] sm:$0xff]
    %v178 = vld [vmem:[#allocation5 + $0x18] sm:$0xff]
    %v179 = vld [vmem:[#allocation5 + $0x20] sm:$0xff]
    %v180 = vld [vmem:[#allocation5 + $0x28] sm:$0xff]
    %v181 = vld [vmem:[#allocation5 + $0x30] sm:$0xff]
    %v182 = vld [vmem:[#allocation5 + $0x38] sm:$0xff]
    %v183 = vld [vmem:[#allocation5 + $0x40] sm:$0xff]
    %v184 = vld [vmem:[#allocation5 + $0x48] sm:$0xff]
    %v185 = vld [vmem:[#allocation5 + $0x50] sm:$0xff]
    %v186 = vld [vmem:[#allocation5 + $0x58] sm:$0xff]
    %v187 = vld [vmem:[#allocation5 + $0x60] sm:$0xff]
    %v188 = vld [vmem:[#allocation5 + $0x68] sm:$0xff]
    %v189 = vld [vmem:[#allocation5 + $0x70] sm:$0xff]
    %v190 = vld [vmem:[#allocation5 + $0x78] sm:$0xff]
    %v191 = vld [vmem:[#allocation5 + $0x80] sm:$0xff]
    %v192 = vld [vmem:[#allocation5 + $0x88] sm:$0xff]
    %v193 = vld [vmem:[#allocation5 + $0x90] sm:$0xff]
    %v194 = vld [vmem:[#allocation5 + $0x98] sm:$0xff]
    %v195 = vld [vmem:[#allocation5 + $0xa0] sm:$0xff]
    %v196 = vld [vmem:[#allocation5 + $0xa8] sm:$0xff]
    %v197 = vld [vmem:[#allocation5 + $0xb0] sm:$0xff]
    %v198 = vld [vmem:[#allocation5 + $0xb8] sm:$0xff]
    %v199 = vld [vmem:[#allocation5 + $0xc0] sm:$0xff]
    %v200 = vld [vmem:[#allocation5 + $0xc8] sm:$0xff]
    %v201 = vld [vmem:[#allocation5 + $0xd0] sm:$0xff]
    %v202 = vld [vmem:[#allocation5 + $0xd8] sm:$0xff]
    %v203 = vld [vmem:[#allocation5 + $0xe0] sm:$0xff]
    %v204 = vld [vmem:[#allocation5 + $0xe8] sm:$0xff]
    %v205 = vld [vmem:[#allocation5 + $0xf0] sm:$0xff]
    %v206 = vld [vmem:[#allocation5 + $0xf8] sm:$0xff]
    %v207 = vld [vmem:[#allocation5 + $0x100] sm:$0xff]
    %v208 = vld [vmem:[#allocation5 + $0x108] sm:$0xff]
    %v209 = vld [vmem:[#allocation5 + $0x110] sm:$0xff]
    %v210 = vld [vmem:[#allocation5 + $0x118] sm:$0xff]
    %v211 = vld [vmem:[#allocation5 + $0x120] sm:$0xff]
    %v212 = vld [vmem:[#allocation5 + $0x128] sm:$0xff]
    %v213 = vld [vmem:[#allocation5 + $0x130] sm:$0xff]
    %v214 = vld [vmem:[#allocation5 + $0x138] sm:$0xff]
    %v215 = vld [vmem:[#allocation5 + $0x140] sm:$0xff]
    %v216 = vld [vmem:[#allocation5 + $0x148] sm:$0xff]
    %v217 = vld [vmem:[#allocation5 + $0x150] sm:$0xff]
    %v218 = vld [vmem:[#allocation5 + $0x158] sm:$0xff]
    %v219 = vld [vmem:[#allocation5 + $0x160] sm:$0xff]
    %v220 = vld [vmem:[#allocation5 + $0x168] sm:$0xff]
    %v221 = vld [vmem:[#allocation5 + $0x170] sm:$0xff]
    %v222 = vld [vmem:[#allocation5 + $0x178] sm:$0xff]
    %v223 = vld [vmem:[#allocation5 + $0x180] sm:$0xff]
    %v224 = vld [vmem:[#allocation5 + $0x188] sm:$0xff]
    %v225 = vld [vmem:[#allocation5 + $0x190] sm:$0xff]
    %v226 = vld [vmem:[#allocation5 + $0x198] sm:$0xff]
    %v227 = vld [vmem:[#allocation5 + $0x1a0] sm:$0xff]
    %v228 = vld [vmem:[#allocation5 + $0x1a8] sm:$0xff]
    %v229 = vld [vmem:[#allocation5 + $0x1b0] sm:$0xff]
    %v230 = vld [vmem:[#allocation5 + $0x1b8] sm:$0xff]
    %v231 = vld [vmem:[#allocation5 + $0x1c0] sm:$0xff]
    %v232 = vld [vmem:[#allocation5 + $0x1c8] sm:$0xff]
    %v233 = vld [vmem:[#allocation5 + $0x1d0] sm:$0xff]
    %v234 = vld [vmem:[#allocation5 + $0x1d8] sm:$0xff]
    %v235 = vld [vmem:[#allocation5 + $0x1e0] sm:$0xff]
    %v236 = vld [vmem:[#allocation5 + $0x1e8] sm:$0xff]
    %v237 = vld [vmem:[#allocation5 + $0x1f0] sm:$0xff]
    %v238 = vld [vmem:[#allocation5 + $0x1f8] sm:$0xff]
    %v239 = vld [vmem:[#allocation5 + $0x200] sm:$0xff]
    %v240 = vld [vmem:[#allocation5 + $0x208] sm:$0xff]
    %v241 = vld [vmem:[#allocation5 + $0x210] sm:$0xff]
    %v242 = vld [vmem:[#allocation5 + $0x218] sm:$0xff]
    %v243 = vld [vmem:[#allocation5 + $0x220] sm:$0xff]
    %v244 = vld [vmem:[#allocation5 + $0x228] sm:$0xff]
    %v245 = vld [vmem:[#allocation5 + $0x230] sm:$0xff]
    %v246 = vld [vmem:[#allocation5 + $0x238] sm:$0xff]
    %v247 = vld [vmem:[#allocation5 + $0x240] sm:$0xff]
    %v248 = vld [vmem:[#allocation5 + $0x248] sm:$0xff]
    %v249 = vld [vmem:[#allocation5 + $0x250] sm:$0xff]
    %v250 = vld [vmem:[#allocation5 + $0x258] sm:$0xff]
    %v251 = vld [vmem:[#allocation5 + $0x260] sm:$0xff]
    %v252 = vld [vmem:[#allocation5 + $0x268] sm:$0xff]
    %v253 = vld [vmem:[#allocation5 + $0x270] sm:$0xff]
    %v254 = vld [vmem:[#allocation5 + $0x278] sm:$0xff]
    %v255 = vld [vmem:[#allocation5 + $0x280] sm:$0xff]
    %v256 = vld [vmem:[#allocation5 + $0x288] sm:$0xff]
    %v257 = vld [vmem:[#allocation5 + $0x290] sm:$0xff]
    %v258 = vld [vmem:[#allocation5 + $0x298] sm:$0xff]
    %v259 = vld [vmem:[#allocation5 + $0x2a0] sm:$0xff]
    %v260 = vld [vmem:[#allocation5 + $0x2a8] sm:$0xff]
    %v261 = vld [vmem:[#allocation5 + $0x2b0] sm:$0xff]
    %v262 = vld [vmem:[#allocation5 + $0x2b8] sm:$0xff]
    %v263 = vld [vmem:[#allocation5 + $0x2c0] sm:$0xff]
    %v264 = vld [vmem:[#allocation5 + $0x2c8] sm:$0xff]
    %v265 = vld [vmem:[#allocation5 + $0x2d0] sm:$0xff]
    %v266 = vld [vmem:[#allocation5 + $0x2d8] sm:$0xff]
    %v267 = vld [vmem:[#allocation5 + $0x2e0] sm:$0xff]
    %v268 = vld [vmem:[#allocation5 + $0x2e8] sm:$0xff]
    %v269 = vld [vmem:[#allocation5 + $0x2f0] sm:$0xff]
    %v270 = vld [vmem:[#allocation5 + $0x2f8] sm:$0xff]
    %v271 = vld [vmem:[#allocation5 + $0x300] sm:$0xff]
    %v272 = vld [vmem:[#allocation5 + $0x308] sm:$0xff]
    %v273 = vld [vmem:[#allocation5 + $0x310] sm:$0xff]
    %v274 = vld [vmem:[#allocation5 + $0x318] sm:$0xff]
    %v275 = vld [vmem:[#allocation5 + $0x320] sm:$0xff]
    %v276 = vld [vmem:[#allocation5 + $0x328] sm:$0xff]
    %v277 = vld [vmem:[#allocation5 + $0x330] sm:$0xff]
    %v278 = vld [vmem:[#allocation5 + $0x338] sm:$0xff]
    %v279 = vld [vmem:[#allocation5 + $0x340] sm:$0xff]
    %v280 = vld [vmem:[#allocation5 + $0x348] sm:$0xff]
    %v281 = vld [vmem:[#allocation5 + $0x350] sm:$0xff]
    %v282 = vld [vmem:[#allocation5 + $0x358] sm:$0xff]
    %v283 = vld [vmem:[#allocation5 + $0x360] sm:$0xff]
    %v284 = vld [vmem:[#allocation5 + $0x368] sm:$0xff]
    %v285 = vld [vmem:[#allocation5 + $0x370] sm:$0xff]
    %v286 = vld [vmem:[#allocation5 + $0x378] sm:$0xff]
    %v287 = vld [vmem:[#allocation5 + $0x380] sm:$0xff]
    %v288 = vld [vmem:[#allocation5 + $0x388] sm:$0xff]
    %v289 = vld [vmem:[#allocation5 + $0x390] sm:$0xff]
    %v290 = vld [vmem:[#allocation5 + $0x398] sm:$0xff]
    %v291 = vld [vmem:[#allocation5 + $0x3a0] sm:$0xff]
    %v292 = vld [vmem:[#allocation5 + $0x3a8] sm:$0xff]
    %v293 = vld [vmem:[#allocation5 + $0x3b0] sm:$0xff]
    %v294 = vld [vmem:[#allocation5 + $0x3b8] sm:$0xff]
    %v295 = vld [vmem:[#allocation5 + $0x3c0] sm:$0xff]
    %v296 = vld [vmem:[#allocation5 + $0x3c8] sm:$0xff]
    %v297 = vld [vmem:[#allocation5 + $0x3d0] sm:$0xff]
    %v298 = vld [vmem:[#allocation5 + $0x3d8] sm:$0xff]
    %v299 = vld [vmem:[#allocation5 + $0x3e0] sm:$0xff]
    %v300 = vld [vmem:[#allocation5 + $0x3e8] sm:$0xff]
    %v301 = vld [vmem:[#allocation5 + $0x3f0] sm:$0xff]
    %v302 = vld [vmem:[#allocation5 + $0x3f8] sm:$0xff]
    %v303 = vld [vmem:[#allocation7] sm:$0xf]
    %v305 = vlaneseq
    %v306 = vshrl.u32 %v305, 7
    %v307 = vsub.s32 0, %v306
    %v308 = vrot.slane %v303, %v307
    %v309 = vlaneseq
    %v310 = vshrl.u32 %v309, 7
    %v311 = vsub.s32 1, %v310
    %v312 = vrot.slane %v303, %v311
    %v313 = vlaneseq
    %v314 = vshrl.u32 %v313, 7
    %v315 = vsub.s32 2, %v314
    %v316 = vrot.slane %v303, %v315
    %v317 = vlaneseq
    %v318 = vshrl.u32 %v317, 7
    %v319 = vsub.s32 3, %v318
    %v320 = vrot.slane %v303, %v319
    %v327 = vunpack.c.l.b16 %v169
    %v328 = vunpack.c.h.b16 %v169
    %v329 = vunpack.c.l.b16 %v170
    %v330 = vunpack.c.h.b16 %v170
    %v331 = vpack.c.b16 %v327, %v327
    %v332 = vpack.c.b16 %v328, %v328
    %v333 = vpack.c.b16 %v329, %v329
    %v334 = vpack.c.b16 %v330, %v330
    %v467 = vunpack.c.l.b16 %v175
    %v468 = vunpack.c.h.b16 %v175
    %v469 = vunpack.c.l.b16 %v176
    %v470 = vunpack.c.h.b16 %v176
    %v471 = vunpack.c.l.b16 %v177
    %v472 = vunpack.c.h.b16 %v177
    %v473 = vunpack.c.l.b16 %v178
    %v474 = vunpack.c.h.b16 %v178
    %v475 = vunpack.c.l.b16 %v179
    %v476 = vunpack.c.h.b16 %v179
    %v477 = vunpack.c.l.b16 %v180
    %v478 = vunpack.c.h.b16 %v180
    %v479 = vunpack.c.l.b16 %v181
    %v480 = vunpack.c.h.b16 %v181
    %v481 = vunpack.c.l.b16 %v182
    %v482 = vunpack.c.h.b16 %v182
    %v483 = vunpack.c.l.b16 %v183
    %v484 = vunpack.c.h.b16 %v183
    %v485 = vunpack.c.l.b16 %v184
    %v486 = vunpack.c.h.b16 %v184
    %v487 = vunpack.c.l.b16 %v185
    %v488 = vunpack.c.h.b16 %v185
    %v489 = vunpack.c.l.b16 %v186
    %v490 = vunpack.c.h.b16 %v186
    %v491 = vunpack.c.l.b16 %v187
    %v492 = vunpack.c.h.b16 %v187
    %v493 = vunpack.c.l.b16 %v188
    %v494 = vunpack.c.h.b16 %v188
    %v495 = vunpack.c.l.b16 %v189
    %v496 = vunpack.c.h.b16 %v189
    %v497 = vunpack.c.l.b16 %v190
    %v498 = vunpack.c.h.b16 %v190
    %v499 = vunpack.c.l.b16 %v191
    %v500 = vunpack.c.h.b16 %v191
    %v501 = vunpack.c.l.b16 %v192
    %v502 = vunpack.c.h.b16 %v192
    %v503 = vunpack.c.l.b16 %v193
    %v504 = vunpack.c.h.b16 %v193
    %v505 = vunpack.c.l.b16 %v194
    %v506 = vunpack.c.h.b16 %v194
    %v507 = vunpack.c.l.b16 %v195
    %v508 = vunpack.c.h.b16 %v195
    %v509 = vunpack.c.l.b16 %v196
    %v510 = vunpack.c.h.b16 %v196
    %v511 = vunpack.c.l.b16 %v197
    %v512 = vunpack.c.h.b16 %v197
    %v513 = vunpack.c.l.b16 %v198
    %v514 = vunpack.c.h.b16 %v198
    %v515 = vunpack.c.l.b16 %v199
    %v516 = vunpack.c.h.b16 %v199
    %v517 = vunpack.c.l.b16 %v200
    %v518 = vunpack.c.h.b16 %v200
    %v519 = vunpack.c.l.b16 %v201
    %v520 = vunpack.c.h.b16 %v201
    %v521 = vunpack.c.l.b16 %v202
    %v522 = vunpack.c.h.b16 %v202
    %v523 = vunpack.c.l.b16 %v203
    %v524 = vunpack.c.h.b16 %v203
    %v525 = vunpack.c.l.b16 %v204
    %v526 = vunpack.c.h.b16 %v204
    %v527 = vunpack.c.l.b16 %v205
    %v528 = vunpack.c.h.b16 %v205
    %v529 = vunpack.c.l.b16 %v206
    %v530 = vunpack.c.h.b16 %v206
    %v531 = vunpack.c.l.b16 %v207
    %v532 = vunpack.c.h.b16 %v207
    %v533 = vunpack.c.l.b16 %v208
    %v534 = vunpack.c.h.b16 %v208
    %v535 = vunpack.c.l.b16 %v209
    %v536 = vunpack.c.h.b16 %v209
    %v537 = vunpack.c.l.b16 %v210
    %v538 = vunpack.c.h.b16 %v210
    %v539 = vunpack.c.l.b16 %v211
    %v540 = vunpack.c.h.b16 %v211
    %v541 = vunpack.c.l.b16 %v212
    %v542 = vunpack.c.h.b16 %v212
    %v543 = vunpack.c.l.b16 %v213
    %v544 = vunpack.c.h.b16 %v213
    %v545 = vunpack.c.l.b16 %v214
    %v546 = vunpack.c.h.b16 %v214
    %v547 = vunpack.c.l.b16 %v215
    %v548 = vunpack.c.h.b16 %v215
    %v549 = vunpack.c.l.b16 %v216
    %v550 = vunpack.c.h.b16 %v216
    %v551 = vunpack.c.l.b16 %v217
    %v552 = vunpack.c.h.b16 %v217
    %v553 = vunpack.c.l.b16 %v218
    %v554 = vunpack.c.h.b16 %v218
    %v555 = vunpack.c.l.b16 %v219
    %v556 = vunpack.c.h.b16 %v219
    %v557 = vunpack.c.l.b16 %v220
    %v558 = vunpack.c.h.b16 %v220
    %v559 = vunpack.c.l.b16 %v221
    %v560 = vunpack.c.h.b16 %v221
    %v561 = vunpack.c.l.b16 %v222
    %v562 = vunpack.c.h.b16 %v222
    %v563 = vunpack.c.l.b16 %v223
    %v564 = vunpack.c.h.b16 %v223
    %v565 = vunpack.c.l.b16 %v224
    %v566 = vunpack.c.h.b16 %v224
    %v567 = vunpack.c.l.b16 %v225
    %v568 = vunpack.c.h.b16 %v225
    %v569 = vunpack.c.l.b16 %v226
    %v570 = vunpack.c.h.b16 %v226
    %v571 = vunpack.c.l.b16 %v227
    %v572 = vunpack.c.h.b16 %v227
    %v573 = vunpack.c.l.b16 %v228
    %v574 = vunpack.c.h.b16 %v228
    %v575 = vunpack.c.l.b16 %v229
    %v576 = vunpack.c.h.b16 %v229
    %v577 = vunpack.c.l.b16 %v230
    %v578 = vunpack.c.h.b16 %v230
    %v579 = vunpack.c.l.b16 %v231
    %v580 = vunpack.c.h.b16 %v231
    %v581 = vunpack.c.l.b16 %v232
    %v582 = vunpack.c.h.b16 %v232
    %v583 = vunpack.c.l.b16 %v233
    %v584 = vunpack.c.h.b16 %v233
    %v585 = vunpack.c.l.b16 %v234
    %v586 = vunpack.c.h.b16 %v234
    %v587 = vunpack.c.l.b16 %v235
    %v588 = vunpack.c.h.b16 %v235
    %v589 = vunpack.c.l.b16 %v236
    %v590 = vunpack.c.h.b16 %v236
    %v591 = vunpack.c.l.b16 %v237
    %v592 = vunpack.c.h.b16 %v237
    %v593 = vunpack.c.l.b16 %v238
    %v594 = vunpack.c.h.b16 %v238
    %v595 = vunpack.c.l.b16 %v239
    %v596 = vunpack.c.h.b16 %v239
    %v597 = vunpack.c.l.b16 %v240
    %v598 = vunpack.c.h.b16 %v240
    %v599 = vunpack.c.l.b16 %v241
    %v600 = vunpack.c.h.b16 %v241
    %v601 = vunpack.c.l.b16 %v242
    %v602 = vunpack.c.h.b16 %v242
    %v603 = vunpack.c.l.b16 %v243
    %v604 = vunpack.c.h.b16 %v243
    %v605 = vunpack.c.l.b16 %v244
    %v606 = vunpack.c.h.b16 %v244
    %v607 = vunpack.c.l.b16 %v245
    %v608 = vunpack.c.h.b16 %v245
    %v609 = vunpack.c.l.b16 %v246
    %v610 = vunpack.c.h.b16 %v246
    %v611 = vunpack.c.l.b16 %v247
    %v612 = vunpack.c.h.b16 %v247
    %v613 = vunpack.c.l.b16 %v248
    %v614 = vunpack.c.h.b16 %v248
    %v615 = vunpack.c.l.b16 %v249
    %v616 = vunpack.c.h.b16 %v249
    %v617 = vunpack.c.l.b16 %v250
    %v618 = vunpack.c.h.b16 %v250
    %v619 = vunpack.c.l.b16 %v251
    %v620 = vunpack.c.h.b16 %v251
    %v621 = vunpack.c.l.b16 %v252
    %v622 = vunpack.c.h.b16 %v252
    %v623 = vunpack.c.l.b16 %v253
    %v624 = vunpack.c.h.b16 %v253
    %v625 = vunpack.c.l.b16 %v254
    %v626 = vunpack.c.h.b16 %v254
    %v627 = vunpack.c.l.b16 %v255
    %v628 = vunpack.c.h.b16 %v255
    %v629 = vunpack.c.l.b16 %v256
    %v630 = vunpack.c.h.b16 %v256
    %v631 = vunpack.c.l.b16 %v257
    %v632 = vunpack.c.h.b16 %v257
    %v633 = vunpack.c.l.b16 %v258
    %v634 = vunpack.c.h.b16 %v258
    %v635 = vunpack.c.l.b16 %v259
    %v636 = vunpack.c.h.b16 %v259
    %v637 = vunpack.c.l.b16 %v260
    %v638 = vunpack.c.h.b16 %v260
    %v639 = vunpack.c.l.b16 %v261
    %v640 = vunpack.c.h.b16 %v261
    %v641 = vunpack.c.l.b16 %v262
    %v642 = vunpack.c.h.b16 %v262
    %v643 = vunpack.c.l.b16 %v263
    %v644 = vunpack.c.h.b16 %v263
    %v645 = vunpack.c.l.b16 %v264
    %v646 = vunpack.c.h.b16 %v264
    %v647 = vunpack.c.l.b16 %v265
    %v648 = vunpack.c.h.b16 %v265
    %v649 = vunpack.c.l.b16 %v266
    %v650 = vunpack.c.h.b16 %v266
    %v651 = vunpack.c.l.b16 %v267
    %v652 = vunpack.c.h.b16 %v267
    %v653 = vunpack.c.l.b16 %v268
    %v654 = vunpack.c.h.b16 %v268
    %v655 = vunpack.c.l.b16 %v269
    %v656 = vunpack.c.h.b16 %v269
    %v657 = vunpack.c.l.b16 %v270
    %v658 = vunpack.c.h.b16 %v270
    %v659 = vunpack.c.l.b16 %v271
    %v660 = vunpack.c.h.b16 %v271
    %v661 = vunpack.c.l.b16 %v272
    %v662 = vunpack.c.h.b16 %v272
    %v663 = vunpack.c.l.b16 %v273
    %v664 = vunpack.c.h.b16 %v273
    %v665 = vunpack.c.l.b16 %v274
    %v666 = vunpack.c.h.b16 %v274
    %v667 = vunpack.c.l.b16 %v275
    %v668 = vunpack.c.h.b16 %v275
    %v669 = vunpack.c.l.b16 %v276
    %v670 = vunpack.c.h.b16 %v276
    %v671 = vunpack.c.l.b16 %v277
    %v672 = vunpack.c.h.b16 %v277
    %v673 = vunpack.c.l.b16 %v278
    %v674 = vunpack.c.h.b16 %v278
    %v675 = vunpack.c.l.b16 %v279
    %v676 = vunpack.c.h.b16 %v279
    %v677 = vunpack.c.l.b16 %v280
    %v678 = vunpack.c.h.b16 %v280
    %v679 = vunpack.c.l.b16 %v281
    %v680 = vunpack.c.h.b16 %v281
    %v681 = vunpack.c.l.b16 %v282
    %v682 = vunpack.c.h.b16 %v282
    %v683 = vunpack.c.l.b16 %v283
    %v684 = vunpack.c.h.b16 %v283
    %v685 = vunpack.c.l.b16 %v284
    %v686 = vunpack.c.h.b16 %v284
    %v687 = vunpack.c.l.b16 %v285
    %v688 = vunpack.c.h.b16 %v285
    %v689 = vunpack.c.l.b16 %v286
    %v690 = vunpack.c.h.b16 %v286
    %v691 = vunpack.c.l.b16 %v287
    %v692 = vunpack.c.h.b16 %v287
    %v693 = vunpack.c.l.b16 %v288
    %v694 = vunpack.c.h.b16 %v288
    %v695 = vunpack.c.l.b16 %v289
    %v696 = vunpack.c.h.b16 %v289
    %v697 = vunpack.c.l.b16 %v290
    %v698 = vunpack.c.h.b16 %v290
    %v699 = vunpack.c.l.b16 %v291
    %v700 = vunpack.c.h.b16 %v291
    %v701 = vunpack.c.l.b16 %v292
    %v702 = vunpack.c.h.b16 %v292
    %v703 = vunpack.c.l.b16 %v293
    %v704 = vunpack.c.h.b16 %v293
    %v705 = vunpack.c.l.b16 %v294
    %v706 = vunpack.c.h.b16 %v294
    %v707 = vunpack.c.l.b16 %v295
    %v708 = vunpack.c.h.b16 %v295
    %v709 = vunpack.c.l.b16 %v296
    %v710 = vunpack.c.h.b16 %v296
    %v711 = vunpack.c.l.b16 %v297
    %v712 = vunpack.c.h.b16 %v297
    %v713 = vunpack.c.l.b16 %v298
    %v714 = vunpack.c.h.b16 %v298
    %v715 = vunpack.c.l.b16 %v299
    %v716 = vunpack.c.h.b16 %v299
    %v717 = vunpack.c.l.b16 %v300
    %v718 = vunpack.c.h.b16 %v300
    %v719 = vunpack.c.l.b16 %v301
    %v720 = vunpack.c.h.b16 %v301
    %v721 = vunpack.c.l.b16 %v302
    %v722 = vunpack.c.h.b16 %v302
    %v723 = vpack.c.b16 %v471, %v467
    %v724 = vpack.c.b16 %v472, %v468
    %v725 = vpack.c.b16 %v473, %v469
    %v726 = vpack.c.b16 %v474, %v470
    %v727 = vpack.c.b16 %v479, %v475
    %v728 = vpack.c.b16 %v480, %v476
    %v729 = vpack.c.b16 %v481, %v477
    %v730 = vpack.c.b16 %v482, %v478
    %v731 = vpack.c.b16 %v487, %v483
    %v732 = vpack.c.b16 %v488, %v484
    %v733 = vpack.c.b16 %v489, %v485
    %v734 = vpack.c.b16 %v490, %v486
    %v735 = vpack.c.b16 %v495, %v491
    %v736 = vpack.c.b16 %v496, %v492
    %v737 = vpack.c.b16 %v497, %v493
    %v738 = vpack.c.b16 %v498, %v494
    %v739 = vpack.c.b16 %v503, %v499
    %v740 = vpack.c.b16 %v504, %v500
    %v741 = vpack.c.b16 %v505, %v501
    %v742 = vpack.c.b16 %v506, %v502
    %v743 = vpack.c.b16 %v511, %v507
    %v744 = vpack.c.b16 %v512, %v508
    %v745 = vpack.c.b16 %v513, %v509
    %v746 = vpack.c.b16 %v514, %v510
    %v747 = vpack.c.b16 %v519, %v515
    %v748 = vpack.c.b16 %v520, %v516
    %v749 = vpack.c.b16 %v521, %v517
    %v750 = vpack.c.b16 %v522, %v518
    %v751 = vpack.c.b16 %v527, %v523
    %v752 = vpack.c.b16 %v528, %v524
    %v753 = vpack.c.b16 %v529, %v525
    %v754 = vpack.c.b16 %v530, %v526
    %v755 = vpack.c.b16 %v535, %v531
    %v756 = vpack.c.b16 %v536, %v532
    %v757 = vpack.c.b16 %v537, %v533
    %v758 = vpack.c.b16 %v538, %v534
    %v759 = vpack.c.b16 %v543, %v539
    %v760 = vpack.c.b16 %v544, %v540
    %v761 = vpack.c.b16 %v545, %v541
    %v762 = vpack.c.b16 %v546, %v542
    %v763 = vpack.c.b16 %v551, %v547
    %v764 = vpack.c.b16 %v552, %v548
    %v765 = vpack.c.b16 %v553, %v549
    %v766 = vpack.c.b16 %v554, %v550
    %v767 = vpack.c.b16 %v559, %v555
    %v768 = vpack.c.b16 %v560, %v556
    %v769 = vpack.c.b16 %v561, %v557
    %v770 = vpack.c.b16 %v562, %v558
    %v771 = vpack.c.b16 %v567, %v563
    %v772 = vpack.c.b16 %v568, %v564
    %v773 = vpack.c.b16 %v569, %v565
    %v774 = vpack.c.b16 %v570, %v566
    %v775 = vpack.c.b16 %v575, %v571
    %v776 = vpack.c.b16 %v576, %v572
    %v777 = vpack.c.b16 %v577, %v573
    %v778 = vpack.c.b16 %v578, %v574
    %v779 = vpack.c.b16 %v583, %v579
    %v780 = vpack.c.b16 %v584, %v580
    %v781 = vpack.c.b16 %v585, %v581
    %v782 = vpack.c.b16 %v586, %v582
    %v783 = vpack.c.b16 %v591, %v587
    %v784 = vpack.c.b16 %v592, %v588
    %v785 = vpack.c.b16 %v593, %v589
    %v786 = vpack.c.b16 %v594, %v590
    %v787 = vpack.c.b16 %v599, %v595
    %v788 = vpack.c.b16 %v600, %v596
    %v789 = vpack.c.b16 %v601, %v597
    %v790 = vpack.c.b16 %v602, %v598
    %v791 = vpack.c.b16 %v607, %v603
    %v792 = vpack.c.b16 %v608, %v604
    %v793 = vpack.c.b16 %v609, %v605
    %v794 = vpack.c.b16 %v610, %v606
    %v795 = vpack.c.b16 %v615, %v611
    %v796 = vpack.c.b16 %v616, %v612
    %v797 = vpack.c.b16 %v617, %v613
    %v798 = vpack.c.b16 %v618, %v614
    %v799 = vpack.c.b16 %v623, %v619
    %v800 = vpack.c.b16 %v624, %v620
    %v801 = vpack.c.b16 %v625, %v621
    %v802 = vpack.c.b16 %v626, %v622
    %v803 = vpack.c.b16 %v631, %v627
    %v804 = vpack.c.b16 %v632, %v628
    %v805 = vpack.c.b16 %v633, %v629
    %v806 = vpack.c.b16 %v634, %v630
    %v807 = vpack.c.b16 %v639, %v635
    %v808 = vpack.c.b16 %v640, %v636
    %v809 = vpack.c.b16 %v641, %v637
    %v810 = vpack.c.b16 %v642, %v638
    %v811 = vpack.c.b16 %v647, %v643
    %v812 = vpack.c.b16 %v648, %v644
    %v813 = vpack.c.b16 %v649, %v645
    %v814 = vpack.c.b16 %v650, %v646
    %v815 = vpack.c.b16 %v655, %v651
    %v816 = vpack.c.b16 %v656, %v652
    %v817 = vpack.c.b16 %v657, %v653
    %v818 = vpack.c.b16 %v658, %v654
    %v819 = vpack.c.b16 %v663, %v659
    %v820 = vpack.c.b16 %v664, %v660
    %v821 = vpack.c.b16 %v665, %v661
    %v822 = vpack.c.b16 %v666, %v662
    %v823 = vpack.c.b16 %v671, %v667
    %v824 = vpack.c.b16 %v672, %v668
    %v825 = vpack.c.b16 %v673, %v669
    %v826 = vpack.c.b16 %v674, %v670
    %v827 = vpack.c.b16 %v679, %v675
    %v828 = vpack.c.b16 %v680, %v676
    %v829 = vpack.c.b16 %v681, %v677
    %v830 = vpack.c.b16 %v682, %v678
    %v831 = vpack.c.b16 %v687, %v683
    %v832 = vpack.c.b16 %v688, %v684
    %v833 = vpack.c.b16 %v689, %v685
    %v834 = vpack.c.b16 %v690, %v686
    %v835 = vpack.c.b16 %v695, %v691
    %v836 = vpack.c.b16 %v696, %v692
    %v837 = vpack.c.b16 %v697, %v693
    %v838 = vpack.c.b16 %v698, %v694
    %v839 = vpack.c.b16 %v703, %v699
    %v840 = vpack.c.b16 %v704, %v700
    %v841 = vpack.c.b16 %v705, %v701
    %v842 = vpack.c.b16 %v706, %v702
    %v843 = vpack.c.b16 %v711, %v707
    %v844 = vpack.c.b16 %v712, %v708
    %v845 = vpack.c.b16 %v713, %v709
    %v846 = vpack.c.b16 %v714, %v710
    %v847 = vpack.c.b16 %v719, %v715
    %v848 = vpack.c.b16 %v720, %v716
    %v849 = vpack.c.b16 %v721, %v717
    %v850 = vpack.c.b16 %v722, %v718
    %979 = vmatprep.subr.bf16.mxu0 %v752
    %980 = vmatpush1.bf16.msra.mxu0 %v751
    %981 = vmatprep.subr.bf16.mxu0 %v748
    %982 = vmatpush1.bf16.msra.mxu0 %v747
    %983 = vmatprep.subr.bf16.mxu0 %v744
    %984 = vmatpush1.bf16.msra.mxu0 %v743
    %985 = vmatprep.subr.bf16.mxu0 %v740
    %986 = vmatpush1.bf16.msra.mxu0 %v739
    %987 = vmatprep.subr.bf16.mxu0 %v736
    %988 = vmatpush1.bf16.msra.mxu0 %v735
    %989 = vmatprep.subr.bf16.mxu0 %v732
    %990 = vmatpush1.bf16.msra.mxu0 %v731
    %991 = vmatprep.subr.bf16.mxu0 %v728
    %992 = vmatpush1.bf16.msra.mxu0 %v727
    %993 = vmatprep.subr.bf16.mxu0 %v724
    %994 = vmatpush1.bf16.msra.mxu0 %v723
    %995 = vmatprep.subr.bf16.mxu0 %v784
    %996 = vmatpush2.bf16.msra.mxu0 %v783
    %997 = vmatprep.subr.bf16.mxu0 %v780
    %998 = vmatpush2.bf16.msra.mxu0 %v779
    %999 = vmatprep.subr.bf16.mxu0 %v776
    %1000 = vmatpush2.bf16.msra.mxu0 %v775
    %1001 = vmatprep.subr.bf16.mxu0 %v772
    %1002 = vmatpush2.bf16.msra.mxu0 %v771
    %1003 = vmatprep.subr.bf16.mxu0 %v768
    %1004 = vmatpush2.bf16.msra.mxu0 %v767
    %1005 = vmatprep.subr.bf16.mxu0 %v764
    %1006 = vmatpush2.bf16.msra.mxu0 %v763
    %1007 = vmatprep.subr.bf16.mxu0 %v760
    %1008 = vmatpush2.bf16.msra.mxu0 %v759
    %1009 = vmatprep.subr.bf16.mxu0 %v756
    %1010 = vmatpush2.bf16.msra.mxu0 %v755
    %1011 = vmatprep.mubr.bf16.mxu0 %v332
    %1012 = vmatmul.mubr.bf16.gmra.mxu0 %v331
    %v1013 = vpop.f32.mrf.mxu0
    %v1014 = vadd.f32 %v308, %v1013
    %v1015 = vpop.f32.mrf.mxu0
    %v1016 = vadd.f32 %v312, %v1015
    %v1017 = vpop.f32.mrf.mxu0
    %v1018 = vpop.f32.mrf.mxu0
    %1019 = vdwg.mxu0
    %1020 = vmatprep.subr.bf16.mxu0 %v816
    %1021 = vmatpush1.bf16.msra.mxu0 %v815
    %1022 = vmatprep.subr.bf16.mxu0 %v812
    %1023 = vmatpush1.bf16.msra.mxu0 %v811
    %1024 = vmatprep.subr.bf16.mxu0 %v808
    %1025 = vmatpush1.bf16.msra.mxu0 %v807
    %1026 = vmatprep.subr.bf16.mxu0 %v804
    %1027 = vmatpush1.bf16.msra.mxu0 %v803
    %1028 = vmatprep.subr.bf16.mxu0 %v800
    %1029 = vmatpush1.bf16.msra.mxu0 %v799
    %1030 = vmatprep.subr.bf16.mxu0 %v796
    %1031 = vmatpush1.bf16.msra.mxu0 %v795
    %1032 = vmatprep.subr.bf16.mxu0 %v792
    %1033 = vmatpush1.bf16.msra.mxu0 %v791
    %1034 = vmatprep.subr.bf16.mxu0 %v788
    %1035 = vmatpush1.bf16.msra.mxu0 %v787
    %1036 = vmatprep.subr.bf16.mxu0 %v848
    %1037 = vmatpush2.bf16.msra.mxu0 %v847
    %1038 = vmatprep.subr.bf16.mxu0 %v844
    %1039 = vmatpush2.bf16.msra.mxu0 %v843
    %1040 = vmatprep.subr.bf16.mxu0 %v840
    %1041 = vmatpush2.bf16.msra.mxu0 %v839
    %1042 = vmatprep.subr.bf16.mxu0 %v836
    %1043 = vmatpush2.bf16.msra.mxu0 %v835
    %1044 = vmatprep.subr.bf16.mxu0 %v832
    %1045 = vmatpush2.bf16.msra.mxu0 %v831
    %1046 = vmatprep.subr.bf16.mxu0 %v828
    %1047 = vmatpush2.bf16.msra.mxu0 %v827
    %1048 = vmatprep.subr.bf16.mxu0 %v824
    %1049 = vmatpush2.bf16.msra.mxu0 %v823
    %1050 = vmatprep.subr.bf16.mxu0 %v820
    %1051 = vmatpush2.bf16.msra.mxu0 %v819
    %1052 = vmatprep.mubr.bf16.mxu0 %v334
    %1053 = vmatmul.mubr.bf16.gmra.mxu0 %v333
    %v1054 = vpop.f32.mrf.mxu0
    %v1055 = vadd.f32 %v1014, %v1054
    %v1056 = vpop.f32.mrf.mxu0
    %v1057 = vadd.f32 %v1016, %v1056
    %v1058 = vpop.f32.mrf.mxu0
    %v1059 = vpop.f32.mrf.mxu0
    %1060 = vdwg.mxu0
    %1061 = vmatprep.subr.bf16.mxu0 %v754
    %1062 = vmatpush1.bf16.msra.mxu0 %v753
    %1063 = vmatprep.subr.bf16.mxu0 %v750
    %1064 = vmatpush1.bf16.msra.mxu0 %v749
    %1065 = vmatprep.subr.bf16.mxu0 %v746
    %1066 = vmatpush1.bf16.msra.mxu0 %v745
    %1067 = vmatprep.subr.bf16.mxu0 %v742
    %1068 = vmatpush1.bf16.msra.mxu0 %v741
    %1069 = vmatprep.subr.bf16.mxu0 %v738
    %1070 = vmatpush1.bf16.msra.mxu0 %v737
    %1071 = vmatprep.subr.bf16.mxu0 %v734
    %1072 = vmatpush1.bf16.msra.mxu0 %v733
    %1073 = vmatprep.subr.bf16.mxu0 %v730
    %1074 = vmatpush1.bf16.msra.mxu0 %v729
    %1075 = vmatprep.subr.bf16.mxu0 %v726
    %1076 = vmatpush1.bf16.msra.mxu0 %v725
    %1077 = vmatprep.subr.bf16.mxu0 %v786
    %1078 = vmatpush2.bf16.msra.mxu0 %v785
    %1079 = vmatprep.subr.bf16.mxu0 %v782
    %1080 = vmatpush2.bf16.msra.mxu0 %v781
    %1081 = vmatprep.subr.bf16.mxu0 %v778
    %1082 = vmatpush2.bf16.msra.mxu0 %v777
    %1083 = vmatprep.subr.bf16.mxu0 %v774
    %1084 = vmatpush2.bf16.msra.mxu0 %v773
    %1085 = vmatprep.subr.bf16.mxu0 %v770
    %1086 = vmatpush2.bf16.msra.mxu0 %v769
    %1087 = vmatprep.subr.bf16.mxu0 %v766
    %1088 = vmatpush2.bf16.msra.mxu0 %v765
    %1089 = vmatprep.subr.bf16.mxu0 %v762
    %1090 = vmatpush2.bf16.msra.mxu0 %v761
    %1091 = vmatprep.subr.bf16.mxu0 %v758
    %1092 = vmatpush2.bf16.msra.mxu0 %v757
    %1093 = vmatprep.mubr.bf16.mxu0 %v332
    %1094 = vmatmul.mubr.bf16.gmra.mxu0 %v331
    %v1095 = vpop.f32.mrf.mxu0
    %v1096 = vadd.f32 %v316, %v1095
    %v1097 = vpop.f32.mrf.mxu0
    %v1098 = vadd.f32 %v320, %v1097
    %v1099 = vpop.f32.mrf.mxu0
    %v1100 = vpop.f32.mrf.mxu0
    %1101 = vdwg.mxu0
    %1102 = vmatprep.subr.bf16.mxu0 %v818
    %1103 = vmatpush1.bf16.msra.mxu0 %v817
    %1104 = vmatprep.subr.bf16.mxu0 %v814
    %1105 = vmatpush1.bf16.msra.mxu0 %v813
    %1106 = vmatprep.subr.bf16.mxu0 %v810
    %1107 = vmatpush1.bf16.msra.mxu0 %v809
    %1108 = vmatprep.subr.bf16.mxu0 %v806
    %1109 = vmatpush1.bf16.msra.mxu0 %v805
    %1110 = vmatprep.subr.bf16.mxu0 %v802
    %1111 = vmatpush1.bf16.msra.mxu0 %v801
    %1112 = vmatprep.subr.bf16.mxu0 %v798
    %1113 = vmatpush1.bf16.msra.mxu0 %v797
    %1114 = vmatprep.subr.bf16.mxu0 %v794
    %1115 = vmatpush1.bf16.msra.mxu0 %v793
    %1116 = vmatprep.subr.bf16.mxu0 %v790
    %1117 = vmatpush1.bf16.msra.mxu0 %v789
    %1118 = vmatprep.subr.bf16.mxu0 %v850
    %1119 = vmatpush2.bf16.msra.mxu0 %v849
    %1120 = vmatprep.subr.bf16.mxu0 %v846
    %1121 = vmatpush2.bf16.msra.mxu0 %v845
    %1122 = vmatprep.subr.bf16.mxu0 %v842
    %1123 = vmatpush2.bf16.msra.mxu0 %v841
    %1124 = vmatprep.subr.bf16.mxu0 %v838
    %1125 = vmatpush2.bf16.msra.mxu0 %v837
    %1126 = vmatprep.subr.bf16.mxu0 %v834
    %1127 = vmatpush2.bf16.msra.mxu0 %v833
    %1128 = vmatprep.subr.bf16.mxu0 %v830
    %1129 = vmatpush2.bf16.msra.mxu0 %v829
    %1130 = vmatprep.subr.bf16.mxu0 %v826
    %1131 = vmatpush2.bf16.msra.mxu0 %v825
    %1132 = vmatprep.subr.bf16.mxu0 %v822
    %1133 = vmatpush2.bf16.msra.mxu0 %v821
    %1134 = vmatprep.mubr.bf16.mxu0 %v334
    %1135 = vmatmul.mubr.bf16.gmra.mxu0 %v333
    %v1136 = vpop.f32.mrf.mxu0
    %v1137 = vadd.f32 %v1096, %v1136
    %v1138 = vpop.f32.mrf.mxu0
    %v1139 = vadd.f32 %v1098, %v1138
    %v1140 = vpop.f32.mrf.mxu0
    %v1141 = vpop.f32.mrf.mxu0
    %1142 = vdwg.mxu0
    %v1143 = vld [vmem:[#allocation8] sm:$0xff]
    %v1144 = vld [vmem:[#allocation8 + $0x8] sm:$0xff]
    %v1145 = vld [vmem:[#allocation8 + $0x10] sm:$0xff]
    %v1146 = vld [vmem:[#allocation8 + $0x18] sm:$0xff]
    %v1147 = vld [vmem:[#allocation8 + $0x20] sm:$0xff]
    %v1148 = vld [vmem:[#allocation8 + $0x28] sm:$0xff]
    %v1149 = vld [vmem:[#allocation8 + $0x30] sm:$0xff]
    %v1150 = vld [vmem:[#allocation8 + $0x38] sm:$0xff]
    %v1151 = vld [vmem:[#allocation10] sm:$0xf]
    %v1153 = vlaneseq
    %v1154 = vshrl.u32 %v1153, 7
    %v1155 = vsub.s32 0, %v1154
    %v1156 = vrot.slane %v1151, %v1155
    %v1157 = vlaneseq
    %v1158 = vshrl.u32 %v1157, 7
    %v1159 = vsub.s32 1, %v1158
    %v1160 = vrot.slane %v1151, %v1159
    %v1161 = vlaneseq
    %v1162 = vshrl.u32 %v1161, 7
    %v1163 = vsub.s32 2, %v1162
    %v1164 = vrot.slane %v1151, %v1163
    %v1165 = vlaneseq
    %v1166 = vshrl.u32 %v1165, 7
    %v1167 = vsub.s32 3, %v1166
    %v1168 = vrot.slane %v1151, %v1167
    %v1181 = vunpack.c.l.b16 %v1143
    %v1182 = vunpack.c.h.b16 %v1143
    %v1183 = vunpack.c.l.b16 %v1144
    %v1184 = vunpack.c.h.b16 %v1144
    %v1185 = vunpack.c.l.b16 %v1145
    %v1186 = vunpack.c.h.b16 %v1145
    %v1187 = vunpack.c.l.b16 %v1146
    %v1188 = vunpack.c.h.b16 %v1146
    %v1189 = vunpack.c.l.b16 %v1147
    %v1190 = vunpack.c.h.b16 %v1147
    %v1191 = vunpack.c.l.b16 %v1148
    %v1192 = vunpack.c.h.b16 %v1148
    %v1193 = vunpack.c.l.b16 %v1149
    %v1194 = vunpack.c.h.b16 %v1149
    %v1195 = vunpack.c.l.b16 %v1150
    %v1196 = vunpack.c.h.b16 %v1150
    %v1197 = vpack.c.b16 %v1185, %v1181
    %v1198 = vpack.c.b16 %v1186, %v1182
    %v1199 = vpack.c.b16 %v1187, %v1183
    %v1200 = vpack.c.b16 %v1188, %v1184
    %v1201 = vpack.c.b16 %v1193, %v1189
    %v1202 = vpack.c.b16 %v1194, %v1190
    %v1203 = vpack.c.b16 %v1195, %v1191
    %v1204 = vpack.c.b16 %v1196, %v1192
    %vm1213 = vcmask 261120
    %v1215 = vsel %vm1213, %v168, 0
    %1217 = vmatprep.subr.bf16.mxu0 0
    %1218 = vmatpush1.bf16.msra.mxu0 0
    %1219 = vmatprep.subr.bf16.mxu0 0
    %1220 = vmatpush1.bf16.msra.mxu0 0
    %1221 = vmatprep.subr.bf16.mxu0 0
    %1222 = vmatpush1.bf16.msra.mxu0 0
    %1223 = vmatprep.subr.bf16.mxu0 0
    %1224 = vmatpush1.bf16.msra.mxu0 0
    %1225 = vmatprep.subr.bf16.mxu0 0
    %1226 = vmatpush1.bf16.msra.mxu0 0
    %1227 = vmatprep.subr.bf16.mxu0 0
    %1228 = vmatpush1.bf16.msra.mxu0 0
    %1229 = vmatprep.subr.bf16.mxu0 %v1202
    %1230 = vmatpush1.bf16.msra.mxu0 %v1201
    %1231 = vmatprep.subr.bf16.mxu0 %v1198
    %1232 = vmatpush1.bf16.msra.mxu0 %v1197
    %1233 = vmatprep.subr.bf16.mxu0 0
    %1234 = vmatpush2.bf16.msra.mxu0 0
    %1235 = vmatprep.subr.bf16.mxu0 0
    %1236 = vmatpush2.bf16.msra.mxu0 0
    %1237 = vmatprep.subr.bf16.mxu0 0
    %1238 = vmatpush2.bf16.msra.mxu0 0
    %1239 = vmatprep.subr.bf16.mxu0 0
    %1240 = vmatpush2.bf16.msra.mxu0 0
    %1241 = vmatprep.subr.bf16.mxu0 0
    %1242 = vmatpush2.bf16.msra.mxu0 0
    %1243 = vmatprep.subr.bf16.mxu0 0
    %1244 = vmatpush2.bf16.msra.mxu0 0
    %1245 = vmatprep.subr.bf16.mxu0 0
    %1246 = vmatpush2.bf16.msra.mxu0 0
    %1247 = vmatprep.subr.bf16.mxu0 0
    %1248 = vmatpush2.bf16.msra.mxu0 0
    %1249 = vmatprep.mubr.bf16.mxu0 0
    %1250 = vmatmul.mubr.bf16.gmra.mxu0 %v1215
    %v1251 = vpop.f32.mrf.mxu0
    %v1252 = vadd.f32 %v1156, %v1251
    %v1253 = vpop.f32.mrf.mxu0
    %v1254 = vadd.f32 %v1160, %v1253
    %v1255 = vpop.f32.mrf.mxu0
    %v1256 = vpop.f32.mrf.mxu0
    %1257 = vdwg.mxu0
    %1258 = vmatprep.subr.bf16.mxu0 0
    %1259 = vmatpush1.bf16.msra.mxu0 0
    %1260 = vmatprep.subr.bf16.mxu0 0
    %1261 = vmatpush1.bf16.msra.mxu0 0
    %1262 = vmatprep.subr.bf16.mxu0 0
    %1263 = vmatpush1.bf16.msra.mxu0 0
    %1264 = vmatprep.subr.bf16.mxu0 0
    %1265 = vmatpush1.bf16.msra.mxu0 0
    %1266 = vmatprep.subr.bf16.mxu0 0
    %1267 = vmatpush1.bf16.msra.mxu0 0
    %1268 = vmatprep.subr.bf16.mxu0 0
    %1269 = vmatpush1.bf16.msra.mxu0 0
    %1270 = vmatprep.subr.bf16.mxu0 %v1204
    %1271 = vmatpush1.bf16.msra.mxu0 %v1203
    %1272 = vmatprep.subr.bf16.mxu0 %v1200
    %1273 = vmatpush1.bf16.msra.mxu0 %v1199
    %1274 = vmatprep.subr.bf16.mxu0 0
    %1275 = vmatpush2.bf16.msra.mxu0 0
    %1276 = vmatprep.subr.bf16.mxu0 0
    %1277 = vmatpush2.bf16.msra.mxu0 0
    %1278 = vmatprep.subr.bf16.mxu0 0
    %1279 = vmatpush2.bf16.msra.mxu0 0
    %1280 = vmatprep.subr.bf16.mxu0 0
    %1281 = vmatpush2.bf16.msra.mxu0 0
    %1282 = vmatprep.subr.bf16.mxu0 0
    %1283 = vmatpush2.bf16.msra.mxu0 0
    %1284 = vmatprep.subr.bf16.mxu0 0
    %1285 = vmatpush2.bf16.msra.mxu0 0
    %1286 = vmatprep.subr.bf16.mxu0 0
    %1287 = vmatpush2.bf16.msra.mxu0 0
    %1288 = vmatprep.subr.bf16.mxu0 0
    %1289 = vmatpush2.bf16.msra.mxu0 0
    %1290 = vmatprep.mubr.bf16.mxu0 0
    %1291 = vmatmul.mubr.bf16.gmra.mxu0 %v1215
    %v1292 = vpop.f32.mrf.mxu0
    %v1293 = vadd.f32 %v1164, %v1292
    %v1294 = vpop.f32.mrf.mxu0
    %v1295 = vadd.f32 %v1168, %v1294
    %v1296 = vpop.f32.mrf.mxu0
    %v1297 = vpop.f32.mrf.mxu0
    %1298 = vdwg.mxu0
    %v1299 = vld [vmem:[#allocation16] sm:$0xf]
    %v1300 = vld [vmem:[#allocation16 + $0x4] sm:$0xf]
    %v1301 = vld [vmem:[#allocation16 + $0x8] sm:$0xf]
    %v1302 = vld [vmem:[#allocation16 + $0xc] sm:$0xf]
    %v1303 = vld [vmem:[%s11] sm:$0x1]
    %v1305 = vlaneseq
    %v1306 = vshrl.u32 %v1305, 7
    %v1307 = vsub.s32 0, %v1306
    %v1308 = vrot.slane %v1303, %v1307
    %v1314 = vunpack.c.l.b16 %v1299
    %v1315 = vunpack.c.l.b16 %v1300
    %v1316 = vunpack.c.l.b16 %v1301
    %v1317 = vunpack.c.l.b16 %v1302
    %v1318 = vpack.c.b16 %v1315, %v1314
    %v1319 = vpack.c.b16 %v1317, %v1316
    %1322 = vmatprep.subr.bf16.mxu0 0
    %1323 = vmatpush1.bf16.msra.mxu0 0
    %1324 = vmatprep.subr.bf16.mxu0 0
    %1325 = vmatpush1.bf16.msra.mxu0 0
    %1326 = vmatprep.subr.bf16.mxu0 0
    %1327 = vmatpush1.bf16.msra.mxu0 0
    %1328 = vmatprep.subr.bf16.mxu0 0
    %1329 = vmatpush1.bf16.msra.mxu0 0
    %1330 = vmatprep.subr.bf16.mxu0 0
    %1331 = vmatpush1.bf16.msra.mxu0 0
    %1332 = vmatprep.subr.bf16.mxu0 0
    %1333 = vmatpush1.bf16.msra.mxu0 0
    %1334 = vmatprep.subr.bf16.mxu0 0
    %1335 = vmatpush1.bf16.msra.mxu0 %v1319
    %1336 = vmatprep.subr.bf16.mxu0 0
    %1337 = vmatpush1.bf16.msra.mxu0 %v1318
    %1338 = vmatprep.subr.bf16.mxu0 0
    %1339 = vmatpush2.bf16.msra.mxu0 0
    %1340 = vmatprep.subr.bf16.mxu0 0
    %1341 = vmatpush2.bf16.msra.mxu0 0
    %1342 = vmatprep.subr.bf16.mxu0 0
    %1343 = vmatpush2.bf16.msra.mxu0 0
    %1344 = vmatprep.subr.bf16.mxu0 0
    %1345 = vmatpush2.bf16.msra.mxu0 0
    %1346 = vmatprep.subr.bf16.mxu0 0
    %1347 = vmatpush2.bf16.msra.mxu0 0
    %1348 = vmatprep.subr.bf16.mxu0 0
    %1349 = vmatpush2.bf16.msra.mxu0 0
    %1350 = vmatprep.subr.bf16.mxu0 0
    %1351 = vmatpush2.bf16.msra.mxu0 0
    %1352 = vmatprep.subr.bf16.mxu0 0
    %1353 = vmatpush2.bf16.msra.mxu0 0
    %1354 = vmatprep.mubr.bf16.mxu0 0
    %1355 = vmatmul.mubr.bf16.gmra.mxu0 %v1215
    %v1356 = vpop.f32.mrf.mxu0
    %v1357 = vadd.f32 %v1308, %v1356
    %v1358 = vpop.f32.mrf.mxu0
    %v1359 = vpop.f32.mrf.mxu0
    %v1360 = vpop.f32.mrf.mxu0
    %1361 = vdwg.mxu0
    %v1366 = vcombine.low %v1252, %v1254
    %v1367 = vcombine.high %v1252, %v1254
    %v1368 = vcombine.low %v1293, %v1295
    %v1369 = vcombine.high %v1293, %v1295
    %v1371 = vunpack.c.l.s4 1966171168
    %v1372 = vunpack.c.0.s8 %v1371
    %v1373 = vlaneseq
    %v1374 = vshrl.u32 %v1373, 7
    %v1375 = vsub.s32 %v1372, %v1374
    %v1376 = vrot.slane %v1366, %v1375
    %v1378 = vunpack.c.l.s4 1966171168
    %v1379 = vunpack.c.0.s8 %v1378
    %v1380 = vlaneseq
    %v1381 = vshrl.u32 %v1380, 7
    %v1382 = vsub.s32 %v1379, %v1381
    %v1383 = vrot.slane %v1367, %v1382
    %v1385 = vunpack.c.l.s4 1966171168
    %v1386 = vunpack.c.0.s8 %v1385
    %v1387 = vlaneseq
    %v1388 = vshrl.u32 %v1387, 7
    %v1389 = vsub.s32 %v1386, %v1388
    %v1390 = vrot.slane %v1368, %v1389
    %v1392 = vunpack.c.l.s4 1966171168
    %v1393 = vunpack.c.0.s8 %v1392
    %v1394 = vlaneseq
    %v1395 = vshrl.u32 %v1394, 7
    %v1396 = vsub.s32 %v1393, %v1395
    %v1397 = vrot.slane %v1369, %v1396
    %v1398 = vcombine.low %v1376, %v1390
    %v1399 = vcombine.high %v1376, %v1390
    %v1400 = vcombine.low %v1383, %v1397
    %v1401 = vcombine.high %v1383, %v1397
    %v1403 = vunpack.c.l.s4 1966171168
    %v1404 = vunpack.c.0.s8 %v1403
    %v1405 = vlaneseq
    %v1406 = vshrl.u32 %v1405, 7
    %v1407 = vsub.s32 %v1404, %v1406
    %v1408 = vrot.slane %v1398, %v1407
    %v1410 = vunpack.c.l.s4 1966171168
    %v1411 = vunpack.c.0.s8 %v1410
    %v1412 = vlaneseq
    %v1413 = vshrl.u32 %v1412, 7
    %v1414 = vsub.s32 %v1411, %v1413
    %v1415 = vrot.slane %v1400, %v1414
    %v1417 = vunpack.c.l.s4 1966171168
    %v1418 = vunpack.c.0.s8 %v1417
    %v1419 = vlaneseq
    %v1420 = vshrl.u32 %v1419, 7
    %v1421 = vsub.s32 %v1418, %v1420
    %v1422 = vrot.slane %v1399, %v1421
    %v1424 = vunpack.c.l.s4 1966171168
    %v1425 = vunpack.c.0.s8 %v1424
    %v1426 = vlaneseq
    %v1427 = vshrl.u32 %v1426, 7
    %v1428 = vsub.s32 %v1425, %v1427
    %v1429 = vrot.slane %v1401, %v1428
    %v1430 = vcombine.high %v1408, %v1408
    %v1431 = vcombine.high %v1415, %v1415
    %v1432 = vcombine.high %v1422, %v1422
    %v1433 = vcombine.high %v1429, %v1429
    %v1434 = vlaneseq
    %v1435 = vshrl.u32 %v1434, 7
    %v1436 = vsub.s32 0, %v1435
    %v1437 = vrot.slane %v1408, %v1436
    %v1438 = vlaneseq
    %v1439 = vshrl.u32 %v1438, 7
    %v1440 = vsub.s32 1, %v1439
    %v1441 = vrot.slane %v1408, %v1440
    %v1442 = vlaneseq
    %v1443 = vshrl.u32 %v1442, 7
    %v1444 = vsub.s32 2, %v1443
    %v1445 = vrot.slane %v1408, %v1444
    %v1446 = vlaneseq
    %v1447 = vshrl.u32 %v1446, 7
    %v1448 = vsub.s32 3, %v1447
    %v1449 = vrot.slane %v1408, %v1448
    %v1450 = vlaneseq
    %v1451 = vshrl.u32 %v1450, 7
    %v1452 = vsub.s32 0, %v1451
    %v1453 = vrot.slane %v1422, %v1452
    %v1454 = vlaneseq
    %v1455 = vshrl.u32 %v1454, 7
    %v1456 = vsub.s32 1, %v1455
    %v1457 = vrot.slane %v1422, %v1456
    %v1458 = vlaneseq
    %v1459 = vshrl.u32 %v1458, 7
    %v1460 = vsub.s32 2, %v1459
    %v1461 = vrot.slane %v1422, %v1460
    %v1462 = vlaneseq
    %v1463 = vshrl.u32 %v1462, 7
    %v1464 = vsub.s32 3, %v1463
    %v1465 = vrot.slane %v1422, %v1464
    %v1466 = vlaneseq
    %v1467 = vshrl.u32 %v1466, 7
    %v1468 = vsub.s32 0, %v1467
    %v1469 = vrot.slane %v1430, %v1468
    %v1470 = vlaneseq
    %v1471 = vshrl.u32 %v1470, 7
    %v1472 = vsub.s32 1, %v1471
    %v1473 = vrot.slane %v1430, %v1472
    %v1474 = vlaneseq
    %v1475 = vshrl.u32 %v1474, 7
    %v1476 = vsub.s32 2, %v1475
    %v1477 = vrot.slane %v1430, %v1476
    %v1478 = vlaneseq
    %v1479 = vshrl.u32 %v1478, 7
    %v1480 = vsub.s32 3, %v1479
    %v1481 = vrot.slane %v1430, %v1480
    %v1482 = vlaneseq
    %v1483 = vshrl.u32 %v1482, 7
    %v1484 = vsub.s32 0, %v1483
    %v1485 = vrot.slane %v1432, %v1484
    %v1486 = vlaneseq
    %v1487 = vshrl.u32 %v1486, 7
    %v1488 = vsub.s32 1, %v1487
    %v1489 = vrot.slane %v1432, %v1488
    %v1490 = vlaneseq
    %v1491 = vshrl.u32 %v1490, 7
    %v1492 = vsub.s32 2, %v1491
    %v1493 = vrot.slane %v1432, %v1492
    %v1494 = vlaneseq
    %v1495 = vshrl.u32 %v1494, 7
    %v1496 = vsub.s32 3, %v1495
    %v1497 = vrot.slane %v1432, %v1496
    %v1498 = vlaneseq
    %v1499 = vshrl.u32 %v1498, 7
    %v1500 = vsub.s32 0, %v1499
    %v1501 = vrot.slane %v1415, %v1500
    %v1502 = vlaneseq
    %v1503 = vshrl.u32 %v1502, 7
    %v1504 = vsub.s32 1, %v1503
    %v1505 = vrot.slane %v1415, %v1504
    %v1506 = vlaneseq
    %v1507 = vshrl.u32 %v1506, 7
    %v1508 = vsub.s32 2, %v1507
    %v1509 = vrot.slane %v1415, %v1508
    %v1510 = vlaneseq
    %v1511 = vshrl.u32 %v1510, 7
    %v1512 = vsub.s32 3, %v1511
    %v1513 = vrot.slane %v1415, %v1512
    %v1514 = vlaneseq
    %v1515 = vshrl.u32 %v1514, 7
    %v1516 = vsub.s32 0, %v1515
    %v1517 = vrot.slane %v1429, %v1516
    %v1518 = vlaneseq
    %v1519 = vshrl.u32 %v1518, 7
    %v1520 = vsub.s32 1, %v1519
    %v1521 = vrot.slane %v1429, %v1520
    %v1522 = vlaneseq
    %v1523 = vshrl.u32 %v1522, 7
    %v1524 = vsub.s32 2, %v1523
    %v1525 = vrot.slane %v1429, %v1524
    %v1526 = vlaneseq
    %v1527 = vshrl.u32 %v1526, 7
    %v1528 = vsub.s32 3, %v1527
    %v1529 = vrot.slane %v1429, %v1528
    %v1530 = vlaneseq
    %v1531 = vshrl.u32 %v1530, 7
    %v1532 = vsub.s32 0, %v1531
    %v1533 = vrot.slane %v1431, %v1532
    %v1534 = vlaneseq
    %v1535 = vshrl.u32 %v1534, 7
    %v1536 = vsub.s32 1, %v1535
    %v1537 = vrot.slane %v1431, %v1536
    %v1538 = vlaneseq
    %v1539 = vshrl.u32 %v1538, 7
    %v1540 = vsub.s32 2, %v1539
    %v1541 = vrot.slane %v1431, %v1540
    %v1542 = vlaneseq
    %v1543 = vshrl.u32 %v1542, 7
    %v1544 = vsub.s32 3, %v1543
    %v1545 = vrot.slane %v1431, %v1544
    %v1546 = vlaneseq
    %v1547 = vshrl.u32 %v1546, 7
    %v1548 = vsub.s32 0, %v1547
    %v1549 = vrot.slane %v1433, %v1548
    %v1550 = vlaneseq
    %v1551 = vshrl.u32 %v1550, 7
    %v1552 = vsub.s32 1, %v1551
    %v1553 = vrot.slane %v1433, %v1552
    %v1554 = vlaneseq
    %v1555 = vshrl.u32 %v1554, 7
    %v1556 = vsub.s32 2, %v1555
    %v1557 = vrot.slane %v1433, %v1556
    %v1558 = vlaneseq
    %v1559 = vshrl.u32 %v1558, 7
    %v1560 = vsub.s32 3, %v1559
    %v1561 = vrot.slane %v1433, %v1560
    %v1594 = vadd.f32 %v1055, %v1437
    %v1595 = vadd.f32 %v1057, %v1441
    %v1596 = vadd.f32 %v1137, %v1445
    %v1597 = vadd.f32 %v1139, %v1449
    %v1598 = vadd.f32 %v1055, %v1453
    %v1599 = vadd.f32 %v1057, %v1457
    %v1600 = vadd.f32 %v1137, %v1461
    %v1601 = vadd.f32 %v1139, %v1465
    %v1602 = vadd.f32 %v1055, %v1469
    %v1603 = vadd.f32 %v1057, %v1473
    %v1604 = vadd.f32 %v1137, %v1477
    %v1605 = vadd.f32 %v1139, %v1481
    %v1606 = vadd.f32 %v1055, %v1485
    %v1607 = vadd.f32 %v1057, %v1489
    %v1608 = vadd.f32 %v1137, %v1493
    %v1609 = vadd.f32 %v1139, %v1497
    %v1610 = vadd.f32 %v1055, %v1501
    %v1611 = vadd.f32 %v1057, %v1505
    %v1612 = vadd.f32 %v1137, %v1509
    %v1613 = vadd.f32 %v1139, %v1513
    %v1614 = vadd.f32 %v1055, %v1517
    %v1615 = vadd.f32 %v1057, %v1521
    %v1616 = vadd.f32 %v1137, %v1525
    %v1617 = vadd.f32 %v1139, %v1529
    %v1618 = vadd.f32 %v1055, %v1533
    %v1619 = vadd.f32 %v1057, %v1537
    %v1620 = vadd.f32 %v1137, %v1541
    %v1621 = vadd.f32 %v1139, %v1545
    %v1622 = vadd.f32 %v1055, %v1549
    %v1623 = vadd.f32 %v1057, %v1553
    %v1624 = vadd.f32 %v1137, %v1557
    %v1625 = vadd.f32 %v1139, %v1561
    %v1626 = vmax.f32 %v1594, 0.0
    %v1627 = vmax.f32 %v1595, 0.0
    %v1628 = vmax.f32 %v1596, 0.0
    %v1629 = vmax.f32 %v1597, 0.0
    %v1630 = vmax.f32 %v1598, 0.0
    %v1631 = vmax.f32 %v1599, 0.0
    %v1632 = vmax.f32 %v1600, 0.0
    %v1633 = vmax.f32 %v1601, 0.0
    %v1634 = vmax.f32 %v1602, 0.0
    %v1635 = vmax.f32 %v1603, 0.0
    %v1636 = vmax.f32 %v1604, 0.0
    %v1637 = vmax.f32 %v1605, 0.0
    %v1638 = vmax.f32 %v1606, 0.0
    %v1639 = vmax.f32 %v1607, 0.0
    %v1640 = vmax.f32 %v1608, 0.0
    %v1641 = vmax.f32 %v1609, 0.0
    %v1642 = vmax.f32 %v1610, 0.0
    %v1643 = vmax.f32 %v1611, 0.0
    %v1644 = vmax.f32 %v1612, 0.0
    %v1645 = vmax.f32 %v1613, 0.0
    %v1646 = vmax.f32 %v1614, 0.0
    %v1647 = vmax.f32 %v1615, 0.0
    %v1648 = vmax.f32 %v1616, 0.0
    %v1649 = vmax.f32 %v1617, 0.0
    %v1650 = vmax.f32 %v1618, 0.0
    %v1651 = vmax.f32 %v1619, 0.0
    %v1652 = vmax.f32 %v1620, 0.0
    %v1653 = vmax.f32 %v1621, 0.0
    %v1654 = vmax.f32 %v1622, 0.0
    %v1655 = vmax.f32 %v1623, 0.0
    %v1656 = vmax.f32 %v1624, 0.0
    %v1657 = vmax.f32 %v1625, 0.0
    %v1658 = vld [vmem:[#allocation11] sm:$0xf]
    %v1660 = vlaneseq
    %v1661 = vshrl.u32 %v1660, 7
    %v1662 = vsub.s32 0, %v1661
    %v1663 = vrot.slane %v1658, %v1662
    %v1664 = vlaneseq
    %v1665 = vshrl.u32 %v1664, 7
    %v1666 = vsub.s32 1, %v1665
    %v1667 = vrot.slane %v1658, %v1666
    %v1668 = vlaneseq
    %v1669 = vshrl.u32 %v1668, 7
    %v1670 = vsub.s32 2, %v1669
    %v1671 = vrot.slane %v1658, %v1670
    %v1672 = vlaneseq
    %v1673 = vshrl.u32 %v1672, 7
    %v1674 = vsub.s32 3, %v1673
    %v1675 = vrot.slane %v1658, %v1674
    %v1680 = vmul.f32 %v1626, %v1663
    %v1681 = vmul.f32 %v1627, %v1667
    %v1682 = vmul.f32 %v1628, %v1671
    %v1683 = vmul.f32 %v1629, %v1675
    %v1684 = vmul.f32 %v1630, %v1663
    %v1685 = vmul.f32 %v1631, %v1667
    %v1686 = vmul.f32 %v1632, %v1671
    %v1687 = vmul.f32 %v1633, %v1675
    %v1688 = vmul.f32 %v1634, %v1663
    %v1689 = vmul.f32 %v1635, %v1667
    %v1690 = vmul.f32 %v1636, %v1671
    %v1691 = vmul.f32 %v1637, %v1675
    %v1692 = vmul.f32 %v1638, %v1663
    %v1693 = vmul.f32 %v1639, %v1667
    %v1694 = vmul.f32 %v1640, %v1671
    %v1695 = vmul.f32 %v1641, %v1675
    %v1696 = vmul.f32 %v1642, %v1663
    %v1697 = vmul.f32 %v1643, %v1667
    %v1698 = vmul.f32 %v1644, %v1671
    %v1699 = vmul.f32 %v1645, %v1675
    %v1700 = vmul.f32 %v1646, %v1663
    %v1701 = vmul.f32 %v1647, %v1667
    %v1702 = vmul.f32 %v1648, %v1671
    %v1703 = vmul.f32 %v1649, %v1675
    %v1704 = vmul.f32 %v1650, %v1663
    %v1705 = vmul.f32 %v1651, %v1667
    %v1706 = vmul.f32 %v1652, %v1671
    %v1707 = vmul.f32 %v1653, %v1675
    %v1708 = vmul.f32 %v1654, %v1663
    %v1709 = vmul.f32 %v1655, %v1667
    %v1710 = vmul.f32 %v1656, %v1671
    %v1711 = vmul.f32 %v1657, %v1675
    %v1712 = vadd.f32 %v1680, %v1681
    %v1713 = vadd.f32 %v1712, %v1682
    %v1714 = vadd.f32 %v1713, %v1683
    %1715 = vadd.xlane.f32.xlu0 %v1714
    %v1716 = vpop.xlane.xlu0 %1715
    %v1717 = vadd.f32 %v1684, %v1685
    %v1718 = vadd.f32 %v1717, %v1686
    %v1719 = vadd.f32 %v1718, %v1687
    %1720 = vadd.xlane.f32.xlu0 %v1719
    %v1721 = vpop.xlane.xlu0 %1720
    %v1722 = vadd.f32 %v1688, %v1689
    %v1723 = vadd.f32 %v1722, %v1690
    %v1724 = vadd.f32 %v1723, %v1691
    %1725 = vadd.xlane.f32.xlu0 %v1724
    %v1726 = vpop.xlane.xlu0 %1725
    %v1727 = vadd.f32 %v1692, %v1693
    %v1728 = vadd.f32 %v1727, %v1694
    %v1729 = vadd.f32 %v1728, %v1695
    %1730 = vadd.xlane.f32.xlu0 %v1729
    %v1731 = vpop.xlane.xlu0 %1730
    %v1732 = vadd.f32 %v1696, %v1697
    %v1733 = vadd.f32 %v1732, %v1698
    %v1734 = vadd.f32 %v1733, %v1699
    %1735 = vadd.xlane.f32.xlu0 %v1734
    %v1736 = vpop.xlane.xlu0 %1735
    %v1737 = vadd.f32 %v1700, %v1701
    %v1738 = vadd.f32 %v1737, %v1702
    %v1739 = vadd.f32 %v1738, %v1703
    %1740 = vadd.xlane.f32.xlu0 %v1739
    %v1741 = vpop.xlane.xlu0 %1740
    %v1742 = vadd.f32 %v1704, %v1705
    %v1743 = vadd.f32 %v1742, %v1706
    %v1744 = vadd.f32 %v1743, %v1707
    %1745 = vadd.xlane.f32.xlu0 %v1744
    %v1746 = vpop.xlane.xlu0 %1745
    %v1747 = vadd.f32 %v1708, %v1709
    %v1748 = vadd.f32 %v1747, %v1710
    %v1749 = vadd.f32 %v1748, %v1711
    %1750 = vadd.xlane.f32.xlu0 %v1749
    %v1751 = vpop.xlane.xlu0 %1750
    %v1760 = vlaneseq
    %v1761 = vand.u32 %v1760, 127
    %v1762 = vlaneseq
    %v1763 = vshrl.u32 %v1762, 7
    %v1764 = vsub.s32 %v1761, %v1763
    %v1765 = vrot.slane %v1716, %v1764
    %v1766 = vlaneseq
    %v1767 = vshrl.u32 %v1766, 7
    %v1768 = vsub.s32 %v1761, %v1767
    %v1769 = vrot.slane %v1721, %v1768
    %v1770 = vlaneseq
    %v1771 = vshrl.u32 %v1770, 7
    %v1772 = vsub.s32 %v1761, %v1771
    %v1773 = vrot.slane %v1726, %v1772
    %v1774 = vlaneseq
    %v1775 = vshrl.u32 %v1774, 7
    %v1776 = vsub.s32 %v1761, %v1775
    %v1777 = vrot.slane %v1731, %v1776
    %v1778 = vlaneseq
    %v1779 = vshrl.u32 %v1778, 7
    %v1780 = vsub.s32 %v1761, %v1779
    %v1781 = vrot.slane %v1736, %v1780
    %v1782 = vlaneseq
    %v1783 = vshrl.u32 %v1782, 7
    %v1784 = vsub.s32 %v1761, %v1783
    %v1785 = vrot.slane %v1741, %v1784
    %v1786 = vlaneseq
    %v1787 = vshrl.u32 %v1786, 7
    %v1788 = vsub.s32 %v1761, %v1787
    %v1789 = vrot.slane %v1746, %v1788
    %v1790 = vlaneseq
    %v1791 = vshrl.u32 %v1790, 7
    %v1792 = vsub.s32 %v1761, %v1791
    %v1793 = vrot.slane %v1751, %v1792
    %vm1794 = vcmask 1041409
    %v1795 = vsel %vm1794, %v1769, %v1765
    %vm1796 = vcmask 1042434
    %v1797 = vsel %vm1796, %v1773, %v1795
    %vm1798 = vcmask 1043459
    %v1799 = vsel %vm1798, %v1777, %v1797
    %vm1800 = vcmask 1044484
    %v1801 = vsel %vm1800, %v1781, %v1799
    %vm1802 = vcmask 1045509
    %v1803 = vsel %vm1802, %v1785, %v1801
    %vm1804 = vcmask 1046534
    %v1805 = vsel %vm1804, %v1789, %v1803
    %vm1806 = vcmask 1047559
    %v1807 = vsel %vm1806, %v1793, %v1805
    %vm1809 = vcmask 64512
    %v1810 = vsel %vm1809, %v1807, -inf
    %1811 = vmax.xlane.f32.xlu0 %v1810
    %v1812 = vpop.xlane.xlu0 %1811
    %v1814 = vlaneseq
    %v1815 = vshrl.u32 %v1814, 7
    %v1816 = vsub.s32 0, %v1815
    %v1817 = vrot.slane %v1812, %v1816
    %v1818 = vlaneseq
    %v1819 = vshrl.u32 %v1818, 7
    %v1820 = vsub.s32 1, %v1819
    %v1821 = vrot.slane %v1812, %v1820
    %v1822 = vlaneseq
    %v1823 = vshrl.u32 %v1822, 7
    %v1824 = vsub.s32 2, %v1823
    %v1825 = vrot.slane %v1812, %v1824
    %v1826 = vlaneseq
    %v1827 = vshrl.u32 %v1826, 7
    %v1828 = vsub.s32 3, %v1827
    %v1829 = vrot.slane %v1812, %v1828
    %v1830 = vlaneseq
    %v1831 = vshrl.u32 %v1830, 7
    %v1832 = vsub.s32 4, %v1831
    %v1833 = vrot.slane %v1812, %v1832
    %v1834 = vlaneseq
    %v1835 = vshrl.u32 %v1834, 7
    %v1836 = vsub.s32 5, %v1835
    %v1837 = vrot.slane %v1812, %v1836
    %v1838 = vlaneseq
    %v1839 = vshrl.u32 %v1838, 7
    %v1840 = vsub.s32 6, %v1839
    %v1841 = vrot.slane %v1812, %v1840
    %v1842 = vlaneseq
    %v1843 = vshrl.u32 %v1842, 7
    %v1844 = vsub.s32 7, %v1843
    %v1845 = vrot.slane %v1812, %v1844
    %v1854 = vsub.f32 %v1716, %v1817
    %v1855 = vsub.f32 %v1721, %v1821
    %v1856 = vsub.f32 %v1726, %v1825
    %v1857 = vsub.f32 %v1731, %v1829
    %v1858 = vsub.f32 %v1736, %v1833
    %v1859 = vsub.f32 %v1741, %v1837
    %v1860 = vsub.f32 %v1746, %v1841
    %v1861 = vsub.f32 %v1751, %v1845
    %v1862 = vmul.f32 %v1854, 1.442695
    %v1863 = vpow.pop %v1862
    %v1864 = vmul.f32 %v1855, 1.442695
    %v1865 = vpow.pop %v1864
    %v1866 = vmul.f32 %v1856, 1.442695
    %v1867 = vpow.pop %v1866
    %v1868 = vmul.f32 %v1857, 1.442695
    %v1869 = vpow.pop %v1868
    %v1870 = vmul.f32 %v1858, 1.442695
    %v1871 = vpow.pop %v1870
    %v1872 = vmul.f32 %v1859, 1.442695
    %v1873 = vpow.pop %v1872
    %v1874 = vmul.f32 %v1860, 1.442695
    %v1875 = vpow.pop %v1874
    %v1876 = vmul.f32 %v1861, 1.442695
    %v1877 = vpow.pop %v1876
    %1886 = vset.pattern.permute.xlu0 0
    %1887 = vperm.xlu0 %1886, %v1863
    %v1888 = vpop.permute.xlu0 %1887
    %1889 = vset.pattern.permute.xlu0 0
    %1890 = vperm.xlu0 %1889, %v1865
    %v1891 = vpop.permute.xlu0 %1890
    %1892 = vset.pattern.permute.xlu0 0
    %1893 = vperm.xlu0 %1892, %v1867
    %v1894 = vpop.permute.xlu0 %1893
    %1895 = vset.pattern.permute.xlu0 0
    %1896 = vperm.xlu0 %1895, %v1869
    %v1897 = vpop.permute.xlu0 %1896
    %1898 = vset.pattern.permute.xlu0 0
    %1899 = vperm.xlu0 %1898, %v1871
    %v1900 = vpop.permute.xlu0 %1899
    %1901 = vset.pattern.permute.xlu0 0
    %1902 = vperm.xlu0 %1901, %v1873
    %v1903 = vpop.permute.xlu0 %1902
    %1904 = vset.pattern.permute.xlu0 0
    %1905 = vperm.xlu0 %1904, %v1875
    %v1906 = vpop.permute.xlu0 %1905
    %1907 = vset.pattern.permute.xlu0 0
    %1908 = vperm.xlu0 %1907, %v1877
    %v1909 = vpop.permute.xlu0 %1908
    %v1910 = vlaneseq
    %v1911 = vshrl.u32 %v1910, 7
    %v1912 = vsub.s32 %v1761, %v1911
    %v1913 = vrot.slane %v1888, %v1912
    %v1914 = vlaneseq
    %v1915 = vshrl.u32 %v1914, 7
    %v1916 = vsub.s32 %v1761, %v1915
    %v1917 = vrot.slane %v1891, %v1916
    %v1918 = vlaneseq
    %v1919 = vshrl.u32 %v1918, 7
    %v1920 = vsub.s32 %v1761, %v1919
    %v1921 = vrot.slane %v1894, %v1920
    %v1922 = vlaneseq
    %v1923 = vshrl.u32 %v1922, 7
    %v1924 = vsub.s32 %v1761, %v1923
    %v1925 = vrot.slane %v1897, %v1924
    %v1926 = vlaneseq
    %v1927 = vshrl.u32 %v1926, 7
    %v1928 = vsub.s32 %v1761, %v1927
    %v1929 = vrot.slane %v1900, %v1928
    %v1930 = vlaneseq
    %v1931 = vshrl.u32 %v1930, 7
    %v1932 = vsub.s32 %v1761, %v1931
    %v1933 = vrot.slane %v1903, %v1932
    %v1934 = vlaneseq
    %v1935 = vshrl.u32 %v1934, 7
    %v1936 = vsub.s32 %v1761, %v1935
    %v1937 = vrot.slane %v1906, %v1936
    %v1938 = vlaneseq
    %v1939 = vshrl.u32 %v1938, 7
    %v1940 = vsub.s32 %v1761, %v1939
    %v1941 = vrot.slane %v1909, %v1940
    %v1942 = vsel %vm1794, %v1917, %v1913
    %v1943 = vsel %vm1796, %v1921, %v1942
    %v1944 = vsel %vm1798, %v1925, %v1943
    %v1945 = vsel %vm1800, %v1929, %v1944
    %v1946 = vsel %vm1802, %v1933, %v1945
    %v1947 = vsel %vm1804, %v1937, %v1946
    %v1948 = vsel %vm1806, %v1941, %v1947
    %v1950 = vsel %vm1809, %v1948, 0.0
    %1951 = vadd.xlane.f32.xlu0 %v1950
    %v1952 = vpop.xlane.xlu0 %1951
    %v1954 = vlaneseq
    %v1955 = vshrl.u32 %v1954, 7
    %v1956 = vsub.s32 0, %v1955
    %v1957 = vrot.slane %v1952, %v1956
    %v1958 = vlaneseq
    %v1959 = vshrl.u32 %v1958, 7
    %v1960 = vsub.s32 1, %v1959
    %v1961 = vrot.slane %v1952, %v1960
    %v1962 = vlaneseq
    %v1963 = vshrl.u32 %v1962, 7
    %v1964 = vsub.s32 2, %v1963
    %v1965 = vrot.slane %v1952, %v1964
    %v1966 = vlaneseq
    %v1967 = vshrl.u32 %v1966, 7
    %v1968 = vsub.s32 3, %v1967
    %v1969 = vrot.slane %v1952, %v1968
    %v1970 = vlaneseq
    %v1971 = vshrl.u32 %v1970, 7
    %v1972 = vsub.s32 4, %v1971
    %v1973 = vrot.slane %v1952, %v1972
    %v1974 = vlaneseq
    %v1975 = vshrl.u32 %v1974, 7
    %v1976 = vsub.s32 5, %v1975
    %v1977 = vrot.slane %v1952, %v1976
    %v1978 = vlaneseq
    %v1979 = vshrl.u32 %v1978, 7
    %v1980 = vsub.s32 6, %v1979
    %v1981 = vrot.slane %v1952, %v1980
    %v1982 = vlaneseq
    %v1983 = vshrl.u32 %v1982, 7
    %v1984 = vsub.s32 7, %v1983
    %v1985 = vrot.slane %v1952, %v1984
    %v1994 = vrcp.pop %v1957
    %v1995 = vmul.f32 %v1863, %v1994
    %v1996 = vrcp.pop %v1961
    %v1997 = vmul.f32 %v1865, %v1996
    %v1998 = vrcp.pop %v1965
    %v1999 = vmul.f32 %v1867, %v1998
    %v2000 = vrcp.pop %v1969
    %v2001 = vmul.f32 %v1869, %v2000
    %v2002 = vrcp.pop %v1973
    %v2003 = vmul.f32 %v1871, %v2002
    %v2004 = vrcp.pop %v1977
    %v2005 = vmul.f32 %v1873, %v2004
    %v2006 = vrcp.pop %v1981
    %v2007 = vmul.f32 %v1875, %v2006
    %v2008 = vrcp.pop %v1985
    %v2009 = vmul.f32 %v1877, %v2008
    %v2010 = vpack.c.bf16 %v1995, %v1995
    %v2011 = vpack.c.bf16 %v1997, %v1997
    %v2012 = vpack.c.bf16 %v1999, %v1999
    %v2013 = vpack.c.bf16 %v2001, %v2001
    %v2014 = vpack.c.bf16 %v2003, %v2003
    %v2015 = vpack.c.bf16 %v2005, %v2005
    %v2016 = vpack.c.bf16 %v2007, %v2007
    %v2017 = vpack.c.bf16 %v2009, %v2009
    %v2026 = vunpack.c.l.b16 %v2010
    %v2027 = vunpack.c.l.b16 %v2011
    %v2028 = vunpack.c.l.b16 %v2012
    %v2029 = vunpack.c.l.b16 %v2013
    %v2030 = vunpack.c.l.b16 %v2014
    %v2031 = vunpack.c.l.b16 %v2015
    %v2032 = vunpack.c.l.b16 %v2016
    %v2033 = vunpack.c.l.b16 %v2017
    %2034 = vset.pattern.permute.xlu0 0
    %2035 = vperm.xlu0 %2034, %v2026
    %v2036 = vpop.permute.xlu0 %2035
    %2037 = vset.pattern.permute.xlu0 0
    %2038 = vperm.xlu0 %2037, %v2027
    %v2039 = vpop.permute.xlu0 %2038
    %2040 = vset.pattern.permute.xlu0 0
    %2041 = vperm.xlu0 %2040, %v2028
    %v2042 = vpop.permute.xlu0 %2041
    %2043 = vset.pattern.permute.xlu0 0
    %2044 = vperm.xlu0 %2043, %v2029
    %v2045 = vpop.permute.xlu0 %2044
    %2046 = vset.pattern.permute.xlu0 0
    %2047 = vperm.xlu0 %2046, %v2030
    %v2048 = vpop.permute.xlu0 %2047
    %2049 = vset.pattern.permute.xlu0 0
    %2050 = vperm.xlu0 %2049, %v2031
    %v2051 = vpop.permute.xlu0 %2050
    %2052 = vset.pattern.permute.xlu0 0
    %2053 = vperm.xlu0 %2052, %v2032
    %v2054 = vpop.permute.xlu0 %2053
    %2055 = vset.pattern.permute.xlu0 0
    %2056 = vperm.xlu0 %2055, %v2033
    %v2057 = vpop.permute.xlu0 %2056
    %v2058 = vlaneseq
    %v2059 = vshrl.u32 %v2058, 7
    %v2060 = vsub.s32 %v1761, %v2059
    %v2061 = vrot.slane %v2036, %v2060
    %v2062 = vlaneseq
    %v2063 = vshrl.u32 %v2062, 7
    %v2064 = vsub.s32 %v1761, %v2063
    %v2065 = vrot.slane %v2039, %v2064
    %v2066 = vlaneseq
    %v2067 = vshrl.u32 %v2066, 7
    %v2068 = vsub.s32 %v1761, %v2067
    %v2069 = vrot.slane %v2042, %v2068
    %v2070 = vlaneseq
    %v2071 = vshrl.u32 %v2070, 7
    %v2072 = vsub.s32 %v1761, %v2071
    %v2073 = vrot.slane %v2045, %v2072
    %v2074 = vlaneseq
    %v2075 = vshrl.u32 %v2074, 7
    %v2076 = vsub.s32 %v1761, %v2075
    %v2077 = vrot.slane %v2048, %v2076
    %v2078 = vlaneseq
    %v2079 = vshrl.u32 %v2078, 7
    %v2080 = vsub.s32 %v1761, %v2079
    %v2081 = vrot.slane %v2051, %v2080
    %v2082 = vlaneseq
    %v2083 = vshrl.u32 %v2082, 7
    %v2084 = vsub.s32 %v1761, %v2083
    %v2085 = vrot.slane %v2054, %v2084
    %v2086 = vlaneseq
    %v2087 = vshrl.u32 %v2086, 7
    %v2088 = vsub.s32 %v1761, %v2087
    %v2089 = vrot.slane %v2057, %v2088
    %v2090 = vsel %vm1794, %v2065, %v2061
    %v2091 = vsel %vm1796, %v2069, %v2090
    %v2092 = vsel %vm1798, %v2073, %v2091
    %v2093 = vsel %vm1800, %v2077, %v2092
    %v2094 = vsel %vm1802, %v2081, %v2093
    %v2095 = vsel %vm1804, %v2085, %v2094
    %v2096 = vsel %vm1806, %v2089, %v2095
    %v2097 = vpack.c.b16 %v2096, %v2096
    %v2099 = vsel %vm1809, %v2097, 0
    %vm2101 = vcmask 1043456
    %v2103 = vsel %vm2101, %v331, 0
    %v2106 = vsel %vm2101, %v332, 0
    %v2109 = vsel %vm2101, %v333, 0
    %v2112 = vsel %vm2101, %v334, 0
    %2114 = vmatprep.subr.bf16.mxu0 0
    %2115 = vmatpush1.bf16.msra.mxu0 0
    %2116 = vmatprep.subr.bf16.mxu0 0
    %2117 = vmatpush1.bf16.msra.mxu0 0
    %2118 = vmatprep.subr.bf16.mxu0 0
    %2119 = vmatpush1.bf16.msra.mxu0 0
    %2120 = vmatprep.subr.bf16.mxu0 0
    %2121 = vmatpush1.bf16.msra.mxu0 0
    %2122 = vmatprep.subr.bf16.mxu0 0
    %2123 = vmatpush1.bf16.msra.mxu0 0
    %2124 = vmatprep.subr.bf16.mxu0 0
    %2125 = vmatpush1.bf16.msra.mxu0 0
    %2126 = vmatprep.subr.bf16.mxu0 0
    %2127 = vmatpush1.bf16.msra.mxu0 0
    %2128 = vmatprep.subr.bf16.mxu0 %v2106
    %2129 = vmatpush1.bf16.msra.mxu0 %v2103
    %2130 = vmatprep.subr.bf16.mxu0 0
    %2131 = vmatpush2.bf16.msra.mxu0 0
    %2132 = vmatprep.subr.bf16.mxu0 0
    %2133 = vmatpush2.bf16.msra.mxu0 0
    %2134 = vmatprep.subr.bf16.mxu0 0
    %2135 = vmatpush2.bf16.msra.mxu0 0
    %2136 = vmatprep.subr.bf16.mxu0 0
    %2137 = vmatpush2.bf16.msra.mxu0 0
    %2138 = vmatprep.subr.bf16.mxu0 0
    %2139 = vmatpush2.bf16.msra.mxu0 0
    %2140 = vmatprep.subr.bf16.mxu0 0
    %2141 = vmatpush2.bf16.msra.mxu0 0
    %2142 = vmatprep.subr.bf16.mxu0 0
    %2143 = vmatpush2.bf16.msra.mxu0 0
    %2144 = vmatprep.subr.bf16.mxu0 0
    %2145 = vmatpush2.bf16.msra.mxu0 0
    %2146 = vmatprep.mubr.bf16.mxu0 0
    %2147 = vmatmul.mubr.bf16.gmra.mxu0 %v2099
    %v2148 = vpop.f32.mrf.mxu0
    %v2149 = vadd.f32 0.0, %v2148
    %v2150 = vpop.f32.mrf.mxu0
    %v2151 = vadd.f32 0.0, %v2150
    %v2152 = vpop.f32.mrf.mxu0
    %v2153 = vpop.f32.mrf.mxu0
    %2154 = vdwg.mxu0
    %2155 = vmatprep.subr.bf16.mxu0 0
    %2156 = vmatpush1.bf16.msra.mxu0 0
    %2157 = vmatprep.subr.bf16.mxu0 0
    %2158 = vmatpush1.bf16.msra.mxu0 0
    %2159 = vmatprep.subr.bf16.mxu0 0
    %2160 = vmatpush1.bf16.msra.mxu0 0
    %2161 = vmatprep.subr.bf16.mxu0 0
    %2162 = vmatpush1.bf16.msra.mxu0 0
    %2163 = vmatprep.subr.bf16.mxu0 0
    %2164 = vmatpush1.bf16.msra.mxu0 0
    %2165 = vmatprep.subr.bf16.mxu0 0
    %2166 = vmatpush1.bf16.msra.mxu0 0
    %2167 = vmatprep.subr.bf16.mxu0 0
    %2168 = vmatpush1.bf16.msra.mxu0 0
    %2169 = vmatprep.subr.bf16.mxu0 %v2112
    %2170 = vmatpush1.bf16.msra.mxu0 %v2109
    %2171 = vmatprep.subr.bf16.mxu0 0
    %2172 = vmatpush2.bf16.msra.mxu0 0
    %2173 = vmatprep.subr.bf16.mxu0 0
    %2174 = vmatpush2.bf16.msra.mxu0 0
    %2175 = vmatprep.subr.bf16.mxu0 0
    %2176 = vmatpush2.bf16.msra.mxu0 0
    %2177 = vmatprep.subr.bf16.mxu0 0
    %2178 = vmatpush2.bf16.msra.mxu0 0
    %2179 = vmatprep.subr.bf16.mxu0 0
    %2180 = vmatpush2.bf16.msra.mxu0 0
    %2181 = vmatprep.subr.bf16.mxu0 0
    %2182 = vmatpush2.bf16.msra.mxu0 0
    %2183 = vmatprep.subr.bf16.mxu0 0
    %2184 = vmatpush2.bf16.msra.mxu0 0
    %2185 = vmatprep.subr.bf16.mxu0 0
    %2186 = vmatpush2.bf16.msra.mxu0 0
    %2187 = vmatprep.mubr.bf16.mxu0 0
    %2188 = vmatmul.mubr.bf16.gmra.mxu0 %v2099
    %v2189 = vpop.f32.mrf.mxu0
    %v2190 = vadd.f32 0.0, %v2189
    %v2191 = vpop.f32.mrf.mxu0
    %v2192 = vadd.f32 0.0, %v2191
    %v2193 = vpop.f32.mrf.mxu0
    %v2194 = vpop.f32.mrf.mxu0
    %2195 = vdwg.mxu0
    %v2196 = vmul.f32 %v171, %v2149
    %v2197 = vmul.f32 %v172, %v2151
    %v2198 = vmul.f32 %v173, %v2190
    %v2199 = vmul.f32 %v174, %v2192
    %v2200 = vpack.c.bf16 %v2196, %v2196
    %v2201 = vpack.c.bf16 %v2197, %v2197
    %v2202 = vpack.c.bf16 %v2198, %v2198
    %v2203 = vpack.c.bf16 %v2199, %v2199
    %v2204 = vld [vmem:[#allocation13] sm:$0xf]
    %v2205 = vld [vmem:[#allocation13 + $0x4] sm:$0xf]
    %v2206 = vld [vmem:[#allocation13 + $0x8] sm:$0xf]
    %v2207 = vld [vmem:[#allocation13 + $0xc] sm:$0xf]
    %v2208 = vld [vmem:[#allocation13 + $0x10] sm:$0xf]
    %v2209 = vld [vmem:[#allocation13 + $0x14] sm:$0xf]
    %v2210 = vld [vmem:[#allocation13 + $0x18] sm:$0xf]
    %v2211 = vld [vmem:[#allocation13 + $0x1c] sm:$0xf]
    %v2212 = vld [vmem:[#allocation13 + $0x20] sm:$0xf]
    %v2213 = vld [vmem:[#allocation13 + $0x24] sm:$0xf]
    %v2214 = vld [vmem:[#allocation13 + $0x28] sm:$0xf]
    %v2215 = vld [vmem:[#allocation13 + $0x2c] sm:$0xf]
    %v2216 = vld [vmem:[#allocation13 + $0x30] sm:$0xf]
    %v2217 = vld [vmem:[#allocation13 + $0x34] sm:$0xf]
    %v2218 = vld [vmem:[#allocation13 + $0x38] sm:$0xf]
    %v2219 = vld [vmem:[#allocation13 + $0x3c] sm:$0xf]
    %v2220 = vld [vmem:[#allocation13 + $0x40] sm:$0xf]
    %v2221 = vld [vmem:[#allocation13 + $0x44] sm:$0xf]
    %v2222 = vld [vmem:[#allocation13 + $0x48] sm:$0xf]
    %v2223 = vld [vmem:[#allocation13 + $0x4c] sm:$0xf]
    %v2224 = vld [vmem:[#allocation13 + $0x50] sm:$0xf]
    %v2225 = vld [vmem:[#allocation13 + $0x54] sm:$0xf]
    %v2226 = vld [vmem:[#allocation13 + $0x58] sm:$0xf]
    %v2227 = vld [vmem:[#allocation13 + $0x5c] sm:$0xf]
    %v2228 = vld [vmem:[#allocation13 + $0x60] sm:$0xf]
    %v2229 = vld [vmem:[#allocation13 + $0x64] sm:$0xf]
    %v2230 = vld [vmem:[#allocation13 + $0x68] sm:$0xf]
    %v2231 = vld [vmem:[#allocation13 + $0x6c] sm:$0xf]
    %v2232 = vld [vmem:[#allocation13 + $0x70] sm:$0xf]
    %v2233 = vld [vmem:[#allocation13 + $0x74] sm:$0xf]
    %v2234 = vld [vmem:[#allocation13 + $0x78] sm:$0xf]
    %v2235 = vld [vmem:[#allocation13 + $0x7c] sm:$0xf]
    %v2236 = vld [vmem:[#allocation13 + $0x80] sm:$0xf]
    %v2237 = vld [vmem:[#allocation13 + $0x84] sm:$0xf]
    %v2238 = vld [vmem:[#allocation13 + $0x88] sm:$0xf]
    %v2239 = vld [vmem:[#allocation13 + $0x8c] sm:$0xf]
    %v2240 = vld [vmem:[#allocation13 + $0x90] sm:$0xf]
    %v2241 = vld [vmem:[#allocation13 + $0x94] sm:$0xf]
    %v2242 = vld [vmem:[#allocation13 + $0x98] sm:$0xf]
    %v2243 = vld [vmem:[#allocation13 + $0x9c] sm:$0xf]
    %v2244 = vld [vmem:[#allocation13 + $0xa0] sm:$0xf]
    %v2245 = vld [vmem:[#allocation13 + $0xa4] sm:$0xf]
    %v2246 = vld [vmem:[#allocation13 + $0xa8] sm:$0xf]
    %v2247 = vld [vmem:[#allocation13 + $0xac] sm:$0xf]
    %v2248 = vld [vmem:[#allocation13 + $0xb0] sm:$0xf]
    %v2249 = vld [vmem:[#allocation13 + $0xb4] sm:$0xf]
    %v2250 = vld [vmem:[#allocation13 + $0xb8] sm:$0xf]
    %v2251 = vld [vmem:[#allocation13 + $0xbc] sm:$0xf]
    %v2252 = vld [vmem:[#allocation13 + $0xc0] sm:$0xf]
    %v2253 = vld [vmem:[#allocation13 + $0xc4] sm:$0xf]
    %v2254 = vld [vmem:[#allocation13 + $0xc8] sm:$0xf]
    %v2255 = vld [vmem:[#allocation13 + $0xcc] sm:$0xf]
    %v2256 = vld [vmem:[#allocation13 + $0xd0] sm:$0xf]
    %v2257 = vld [vmem:[#allocation13 + $0xd4] sm:$0xf]
    %v2258 = vld [vmem:[#allocation13 + $0xd8] sm:$0xf]
    %v2259 = vld [vmem:[#allocation13 + $0xdc] sm:$0xf]
    %v2260 = vld [vmem:[#allocation13 + $0xe0] sm:$0xf]
    %v2261 = vld [vmem:[#allocation13 + $0xe4] sm:$0xf]
    %v2262 = vld [vmem:[#allocation13 + $0xe8] sm:$0xf]
    %v2263 = vld [vmem:[#allocation13 + $0xec] sm:$0xf]
    %v2264 = vld [vmem:[#allocation13 + $0xf0] sm:$0xf]
    %v2265 = vld [vmem:[#allocation13 + $0xf4] sm:$0xf]
    %v2266 = vld [vmem:[#allocation13 + $0xf8] sm:$0xf]
    %v2267 = vld [vmem:[#allocation13 + $0xfc] sm:$0xf]
    %v2268 = vld [vmem:[#allocation14] sm:$0x1]
    %v2270 = vlaneseq
    %v2271 = vshrl.u32 %v2270, 7
    %v2272 = vsub.s32 0, %v2271
    %v2273 = vrot.slane %v2268, %v2272
    %v2339 = vunpack.c.l.b16 %v2204
    %v2340 = vunpack.c.l.b16 %v2205
    %v2341 = vunpack.c.l.b16 %v2206
    %v2342 = vunpack.c.l.b16 %v2207
    %v2343 = vunpack.c.l.b16 %v2208
    %v2344 = vunpack.c.l.b16 %v2209
    %v2345 = vunpack.c.l.b16 %v2210
    %v2346 = vunpack.c.l.b16 %v2211
    %v2347 = vunpack.c.l.b16 %v2212
    %v2348 = vunpack.c.l.b16 %v2213
    %v2349 = vunpack.c.l.b16 %v2214
    %v2350 = vunpack.c.l.b16 %v2215
    %v2351 = vunpack.c.l.b16 %v2216
    %v2352 = vunpack.c.l.b16 %v2217
    %v2353 = vunpack.c.l.b16 %v2218
    %v2354 = vunpack.c.l.b16 %v2219
    %v2355 = vunpack.c.l.b16 %v2220
    %v2356 = vunpack.c.l.b16 %v2221
    %v2357 = vunpack.c.l.b16 %v2222
    %v2358 = vunpack.c.l.b16 %v2223
    %v2359 = vunpack.c.l.b16 %v2224
    %v2360 = vunpack.c.l.b16 %v2225
    %v2361 = vunpack.c.l.b16 %v2226
    %v2362 = vunpack.c.l.b16 %v2227
    %v2363 = vunpack.c.l.b16 %v2228
    %v2364 = vunpack.c.l.b16 %v2229
    %v2365 = vunpack.c.l.b16 %v2230
    %v2366 = vunpack.c.l.b16 %v2231
    %v2367 = vunpack.c.l.b16 %v2232
    %v2368 = vunpack.c.l.b16 %v2233
    %v2369 = vunpack.c.l.b16 %v2234
    %v2370 = vunpack.c.l.b16 %v2235
    %v2371 = vunpack.c.l.b16 %v2236
    %v2372 = vunpack.c.l.b16 %v2237
    %v2373 = vunpack.c.l.b16 %v2238
    %v2374 = vunpack.c.l.b16 %v2239
    %v2375 = vunpack.c.l.b16 %v2240
    %v2376 = vunpack.c.l.b16 %v2241
    %v2377 = vunpack.c.l.b16 %v2242
    %v2378 = vunpack.c.l.b16 %v2243
    %v2379 = vunpack.c.l.b16 %v2244
    %v2380 = vunpack.c.l.b16 %v2245
    %v2381 = vunpack.c.l.b16 %v2246
    %v2382 = vunpack.c.l.b16 %v2247
    %v2383 = vunpack.c.l.b16 %v2248
    %v2384 = vunpack.c.l.b16 %v2249
    %v2385 = vunpack.c.l.b16 %v2250
    %v2386 = vunpack.c.l.b16 %v2251
    %v2387 = vunpack.c.l.b16 %v2252
    %v2388 = vunpack.c.l.b16 %v2253
    %v2389 = vunpack.c.l.b16 %v2254
    %v2390 = vunpack.c.l.b16 %v2255
    %v2391 = vunpack.c.l.b16 %v2256
    %v2392 = vunpack.c.l.b16 %v2257
    %v2393 = vunpack.c.l.b16 %v2258
    %v2394 = vunpack.c.l.b16 %v2259
    %v2395 = vunpack.c.l.b16 %v2260
    %v2396 = vunpack.c.l.b16 %v2261
    %v2397 = vunpack.c.l.b16 %v2262
    %v2398 = vunpack.c.l.b16 %v2263
    %v2399 = vunpack.c.l.b16 %v2264
    %v2400 = vunpack.c.l.b16 %v2265
    %v2401 = vunpack.c.l.b16 %v2266
    %v2402 = vunpack.c.l.b16 %v2267
    %v2403 = vpack.c.b16 %v2340, %v2339
    %v2404 = vpack.c.b16 %v2342, %v2341
    %v2405 = vpack.c.b16 %v2344, %v2343
    %v2406 = vpack.c.b16 %v2346, %v2345
    %v2407 = vpack.c.b16 %v2348, %v2347
    %v2408 = vpack.c.b16 %v2350, %v2349
    %v2409 = vpack.c.b16 %v2352, %v2351
    %v2410 = vpack.c.b16 %v2354, %v2353
    %v2411 = vpack.c.b16 %v2356, %v2355
    %v2412 = vpack.c.b16 %v2358, %v2357
    %v2413 = vpack.c.b16 %v2360, %v2359
    %v2414 = vpack.c.b16 %v2362, %v2361
    %v2415 = vpack.c.b16 %v2364, %v2363
    %v2416 = vpack.c.b16 %v2366, %v2365
    %v2417 = vpack.c.b16 %v2368, %v2367
    %v2418 = vpack.c.b16 %v2370, %v2369
    %v2419 = vpack.c.b16 %v2372, %v2371
    %v2420 = vpack.c.b16 %v2374, %v2373
    %v2421 = vpack.c.b16 %v2376, %v2375
    %v2422 = vpack.c.b16 %v2378, %v2377
    %v2423 = vpack.c.b16 %v2380, %v2379
    %v2424 = vpack.c.b16 %v2382, %v2381
    %v2425 = vpack.c.b16 %v2384, %v2383
    %v2426 = vpack.c.b16 %v2386, %v2385
    %v2427 = vpack.c.b16 %v2388, %v2387
    %v2428 = vpack.c.b16 %v2390, %v2389
    %v2429 = vpack.c.b16 %v2392, %v2391
    %v2430 = vpack.c.b16 %v2394, %v2393
    %v2431 = vpack.c.b16 %v2396, %v2395
    %v2432 = vpack.c.b16 %v2398, %v2397
    %v2433 = vpack.c.b16 %v2400, %v2399
    %v2434 = vpack.c.b16 %v2402, %v2401
    %2467 = vmatprep.subr.bf16.mxu0 0
    %2468 = vmatpush1.bf16.msra.mxu0 %v2410
    %2469 = vmatprep.subr.bf16.mxu0 0
    %2470 = vmatpush1.bf16.msra.mxu0 %v2409
    %2471 = vmatprep.subr.bf16.mxu0 0
    %2472 = vmatpush1.bf16.msra.mxu0 %v2408
    %2473 = vmatprep.subr.bf16.mxu0 0
    %2474 = vmatpush1.bf16.msra.mxu0 %v2407
    %2475 = vmatprep.subr.bf16.mxu0 0
    %2476 = vmatpush1.bf16.msra.mxu0 %v2406
    %2477 = vmatprep.subr.bf16.mxu0 0
    %2478 = vmatpush1.bf16.msra.mxu0 %v2405
    %2479 = vmatprep.subr.bf16.mxu0 0
    %2480 = vmatpush1.bf16.msra.mxu0 %v2404
    %2481 = vmatprep.subr.bf16.mxu0 0
    %2482 = vmatpush1.bf16.msra.mxu0 %v2403
    %2483 = vmatprep.subr.bf16.mxu0 0
    %2484 = vmatpush2.bf16.msra.mxu0 %v2418
    %2485 = vmatprep.subr.bf16.mxu0 0
    %2486 = vmatpush2.bf16.msra.mxu0 %v2417
    %2487 = vmatprep.subr.bf16.mxu0 0
    %2488 = vmatpush2.bf16.msra.mxu0 %v2416
    %2489 = vmatprep.subr.bf16.mxu0 0
    %2490 = vmatpush2.bf16.msra.mxu0 %v2415
    %2491 = vmatprep.subr.bf16.mxu0 0
    %2492 = vmatpush2.bf16.msra.mxu0 %v2414
    %2493 = vmatprep.subr.bf16.mxu0 0
    %2494 = vmatpush2.bf16.msra.mxu0 %v2413
    %2495 = vmatprep.subr.bf16.mxu0 0
    %2496 = vmatpush2.bf16.msra.mxu0 %v2412
    %2497 = vmatprep.subr.bf16.mxu0 0
    %2498 = vmatpush2.bf16.msra.mxu0 %v2411
    %2499 = vmatprep.mubr.bf16.mxu0 %v2201
    %2500 = vmatmul.mubr.bf16.gmra.mxu0 %v2200
    %v2501 = vpop.f32.mrf.mxu0
    %v2502 = vadd.f32 %v2273, %v2501
    %v2503 = vpop.f32.mrf.mxu0
    %v2504 = vpop.f32.mrf.mxu0
    %v2505 = vpop.f32.mrf.mxu0
    %2506 = vdwg.mxu0
    %2507 = vmatprep.subr.bf16.mxu0 0
    %2508 = vmatpush1.bf16.msra.mxu0 %v2426
    %2509 = vmatprep.subr.bf16.mxu0 0
    %2510 = vmatpush1.bf16.msra.mxu0 %v2425
    %2511 = vmatprep.subr.bf16.mxu0 0
    %2512 = vmatpush1.bf16.msra.mxu0 %v2424
    %2513 = vmatprep.subr.bf16.mxu0 0
    %2514 = vmatpush1.bf16.msra.mxu0 %v2423
    %2515 = vmatprep.subr.bf16.mxu0 0
    %2516 = vmatpush1.bf16.msra.mxu0 %v2422
    %2517 = vmatprep.subr.bf16.mxu0 0
    %2518 = vmatpush1.bf16.msra.mxu0 %v2421
    %2519 = vmatprep.subr.bf16.mxu0 0
    %2520 = vmatpush1.bf16.msra.mxu0 %v2420
    %2521 = vmatprep.subr.bf16.mxu0 0
    %2522 = vmatpush1.bf16.msra.mxu0 %v2419
    %2523 = vmatprep.subr.bf16.mxu0 0
    %2524 = vmatpush2.bf16.msra.mxu0 %v2434
    %2525 = vmatprep.subr.bf16.mxu0 0
    %2526 = vmatpush2.bf16.msra.mxu0 %v2433
    %2527 = vmatprep.subr.bf16.mxu0 0
    %2528 = vmatpush2.bf16.msra.mxu0 %v2432
    %2529 = vmatprep.subr.bf16.mxu0 0
    %2530 = vmatpush2.bf16.msra.mxu0 %v2431
    %2531 = vmatprep.subr.bf16.mxu0 0
    %2532 = vmatpush2.bf16.msra.mxu0 %v2430
    %2533 = vmatprep.subr.bf16.mxu0 0
    %2534 = vmatpush2.bf16.msra.mxu0 %v2429
    %2535 = vmatprep.subr.bf16.mxu0 0
    %2536 = vmatpush2.bf16.msra.mxu0 %v2428
    %2537 = vmatprep.subr.bf16.mxu0 0
    %2538 = vmatpush2.bf16.msra.mxu0 %v2427
    %2539 = vmatprep.mubr.bf16.mxu0 %v2203
    %2540 = vmatmul.mubr.bf16.gmra.mxu0 %v2202
    %v2541 = vpop.f32.mrf.mxu0
    %v2542 = vadd.f32 %v2502, %v2541
    %v2543 = vpop.f32.mrf.mxu0
    %v2544 = vpop.f32.mrf.mxu0
    %v2545 = vpop.f32.mrf.mxu0
    %2546 = vdwg.mxu0
    %v2547 = vadd.f32 %v1357, %v2542
    %v2548 = vmax.f32 %v2547, 0.0
    %2549 = vst.msk [vmem:[#allocation2] sm:$0xff] %vm1213, %v2548
    %v2550 = vld [vmem:[%s12] sm:$0xff]
    %v2551 = vld [vmem:[%s12 + $0x8] sm:$0xff]
    %v2552 = vld [vmem:[%s12 + $0x10] sm:$0xff]
    %v2553 = vld [vmem:[%s12 + $0x18] sm:$0xff]
    %v2554 = vld [vmem:[%s13] sm:$0x1]
    %v2556 = vlaneseq
    %v2557 = vshrl.u32 %v2556, 7
    %v2558 = vsub.s32 0, %v2557
    %v2559 = vrot.slane %v2554, %v2558
    %v2562 = vsel %vm1213, %v2548, 0
    %2564 = vmatprep.subr.mxu0 0.0
    %2565 = vmatpush1.msra.mxu0 0.0
    %2566 = vmatprep.subr.mxu0 0.0
    %2567 = vmatpush1.msra.mxu0 0.0
    %2568 = vmatprep.subr.mxu0 0.0
    %2569 = vmatpush1.msra.mxu0 0.0
    %2570 = vmatprep.subr.mxu0 0.0
    %2571 = vmatpush1.msra.mxu0 0.0
    %2572 = vmatprep.subr.mxu0 0.0
    %2573 = vmatpush1.msra.mxu0 0.0
    %2574 = vmatprep.subr.mxu0 0.0
    %2575 = vmatpush1.msra.mxu0 0.0
    %2576 = vmatprep.subr.mxu0 0.0
    %2577 = vmatpush1.msra.mxu0 0.0
    %2578 = vmatprep.subr.mxu0 0.0
    %2579 = vmatpush1.msra.mxu0 0.0
    %2580 = vmatprep.subr.mxu0 0.0
    %2581 = vmatpush1.msra.mxu0 0.0
    %2582 = vmatprep.subr.mxu0 0.0
    %2583 = vmatpush1.msra.mxu0 0.0
    %2584 = vmatprep.subr.mxu0 0.0
    %2585 = vmatpush1.msra.mxu0 0.0
    %2586 = vmatprep.subr.mxu0 0.0
    %2587 = vmatpush1.msra.mxu0 0.0
    %2588 = vmatprep.subr.mxu0 0.0
    %2589 = vmatpush1.msra.mxu0 %v2553
    %2590 = vmatprep.subr.mxu0 0.0
    %2591 = vmatpush1.msra.mxu0 %v2552
    %2592 = vmatprep.subr.mxu0 0.0
    %2593 = vmatpush1.msra.mxu0 %v2551
    %2594 = vmatprep.subr.mxu0 0.0
    %2595 = vmatpush1.msra.mxu0 %v2550
    %2596 = vmatprep.subr.mxu0 0.0
    %2597 = vmatpush2.msra.mxu0 0.0
    %2598 = vmatprep.subr.mxu0 0.0
    %2599 = vmatpush2.msra.mxu0 0.0
    %2600 = vmatprep.subr.mxu0 0.0
    %2601 = vmatpush2.msra.mxu0 0.0
    %2602 = vmatprep.subr.mxu0 0.0
    %2603 = vmatpush2.msra.mxu0 0.0
    %2604 = vmatprep.subr.mxu0 0.0
    %2605 = vmatpush2.msra.mxu0 0.0
    %2606 = vmatprep.subr.mxu0 0.0
    %2607 = vmatpush2.msra.mxu0 0.0
    %2608 = vmatprep.subr.mxu0 0.0
    %2609 = vmatpush2.msra.mxu0 0.0
    %2610 = vmatprep.subr.mxu0 0.0
    %2611 = vmatpush2.msra.mxu0 0.0
    %2612 = vmatprep.subr.mxu0 0.0
    %2613 = vmatpush2.msra.mxu0 0.0
    %2614 = vmatprep.subr.mxu0 0.0
    %2615 = vmatpush2.msra.mxu0 0.0
    %2616 = vmatprep.subr.mxu0 0.0
    %2617 = vmatpush2.msra.mxu0 0.0
    %2618 = vmatprep.subr.mxu0 0.0
    %2619 = vmatpush2.msra.mxu0 0.0
    %2620 = vmatprep.subr.mxu0 0.0
    %2621 = vmatpush2.msra.mxu0 0.0
    %2622 = vmatprep.subr.mxu0 0.0
    %2623 = vmatpush2.msra.mxu0 0.0
    %2624 = vmatprep.subr.mxu0 0.0
    %2625 = vmatpush2.msra.mxu0 0.0
    %2626 = vmatprep.subr.mxu0 0.0
    %2627 = vmatpush2.msra.mxu0 0.0
    %2628 = vmatprep.mubr.f32.mxu0 0.0
    %2629 = vmatmul.mubr.f32.gmra.mxu0 %v2562
    %v2630 = vpop.f32.mrf.mxu0
    %v2631 = vadd.f32 %v2559, %v2630
    %v2632 = vpop.f32.mrf.mxu0
    %2633 = vdwg.mxu0
    %2634 = vst [vmem:[%s14] sm:$0xff] %v2631
    // Predicated region
    $region98: #{rnn_single_forward.1} parent=1 // pred_check
      _
    $region99: #{rnn_single_forward.1} parent=1 // pred_check_branch
      %2636 = sbr.rel (0) target = $region101
    $region100: #{rnn_single_forward.1} parent=1 // pred_region
      _
    $region101: #{rnn_single_forward.1} parent=1 // pred_fallthru
      _
    // Predicated region
    $region102: #{rnn_single_forward.1} parent=1 // pred_check
      _
    $region103: #{rnn_single_forward.1} parent=1 // pred_check_branch
      %2638 = sbr.rel (0) target = $region105
    $region104: #{rnn_single_forward.1} parent=1 // pred_region
      _
    $region105: #{rnn_single_forward.1} parent=1 // pred_fallthru
      _
    %2639 = vsyncpa [#allocation4], 1
    %2640 = vsyncpa [#allocation6], 1
    %2641 = vsyncpa [#allocation9], 1
    %2642 = vsyncpa [#allocation12], 1
    %2643 = vsyncpa [#allocation15], 1

</llo_original>
